<compile_context>
chip_gen: v6e
topology: v6e:2x2x1
jax: 0.10.0
libtpu: 0.0.40
codegen_flags: <defaults>
</compile_context>

<pallas_src>
import functools

import jax
import jax.numpy as jnp
from jax.experimental import pallas as pl
from jax.experimental.pallas import tpu as pltpu


def _layernorm(x, gamma, beta, eps=1e-5):
    mean = jnp.mean(x, axis=-1, keepdims=True)
    var = jnp.mean((x - mean) ** 2, axis=-1, keepdims=True)
    return (x - mean) * jax.lax.rsqrt(var + eps) * gamma + beta


def _encoder_block_kernel(
    x_ref,      # (Bt, S, E)  f32
    wqkv_ref,   # (E, 3E)     compute_dtype  (pre-transposed, Q columns pre-scaled)
    bqkv_ref,   # (1, 3E)     f32            (Q part pre-scaled)
    wo_ref,     # (E, E)      compute_dtype  (pre-transposed)
    w1_ref,     # (E, FF)     compute_dtype  (pre-transposed)
    b1_ref,     # (1, FF)     f32
    w2_ref,     # (FF, E)     compute_dtype  (pre-transposed)
    vecs_ref,   # (6, E)      f32  rows = [bo, g1, be1, b2, g2, be2]
    o_ref,      # (Bt, S, E)  f32
    *,
    num_heads,
    compute_dtype,
):
    Bt, S, E = x_ref.shape
    H = num_heads
    Dh = E // H

    vecs = vecs_ref[...]                       # (6, E) f32, one cheap VMEM load
    bo, g1, be1 = vecs[0:1], vecs[1:2], vecs[2:3]
    b2, g2, be2 = vecs[3:4], vecs[4:5], vecs[5:6]

    x = x_ref[...].reshape(Bt * S, E)                                   # (Bt*S, E) f32

    # ---- fused QKV projection: one MXU matmul, weight already (E, 3E) ----
    qkv = jnp.dot(x.astype(compute_dtype), wqkv_ref[...],
                  preferred_element_type=jnp.float32) + bqkv_ref[...]   # (Bt*S, 3E) f32

    # ---- gather all heads into one (Bt*H, S, Dh) batch (static 2-D slices) ----
    def gather_heads(col_base):
        tiles = [qkv[b * S:(b + 1) * S,
                     col_base + h * Dh:col_base + (h + 1) * Dh]
                 for b in range(Bt) for h in range(H)]
        return jnp.stack(tiles, axis=0).astype(compute_dtype)           # (Bt*H, S, Dh)

    qh = gather_heads(0)          # 1/sqrt(Dh) already folded into W_q / b_q
    kh = gather_heads(E)
    vh = gather_heads(2 * E)

    # ---- attention for all heads with two batched dot_generals ----
    scores = jnp.einsum("bqd,bkd->bqk", qh, kh,
                        preferred_element_type=jnp.float32)             # (Bt*H, S, S)
    scores = scores - jnp.max(scores, axis=-1, keepdims=True)
    p = jnp.exp(scores)
    p = p * pl.reciprocal(jnp.sum(p, axis=-1, keepdims=True), approx=True)

    ctx = jnp.einsum("bqk,bkd->bqd", p.astype(compute_dtype), vh,
                     preferred_element_type=jnp.float32)                # (Bt*H, S, Dh)

    # ---- back to (Bt*S, E): lane-concat heads once, row-concat batch ----
    rows = [jnp.concatenate([ctx[b * H + h] for h in range(H)], axis=-1)
            for b in range(Bt)]                                         # each (S, E)
    ctx2 = rows[0] if Bt == 1 else jnp.concatenate(rows, axis=0)        # (Bt*S, E)

    attn = jnp.dot(ctx2.astype(compute_dtype), wo_ref[...],
                   preferred_element_type=jnp.float32) + bo

    # ---- residual + norm1 (dropout p=0 -> identity) ----
    y = _layernorm(x + attn, g1, be1)

    # ---- feed-forward: Linear -> (Dropout=id) -> ReLU -> Linear ----
    h = jnp.dot(y.astype(compute_dtype), w1_ref[...],
                preferred_element_type=jnp.float32) + b1_ref[...]
    h = jnp.maximum(h, 0.0)
    ff = jnp.dot(h.astype(compute_dtype), w2_ref[...],
                 preferred_element_type=jnp.float32) + b2

    # ---- residual + norm2 ----
    out = _layernorm(y + ff, g2, be2)
    o_ref[...] = out.reshape(Bt, S, E).astype(o_ref.dtype)


def _prepare_params(params, num_heads, compute_dtype):
    """Host-side (one-time) weight prep: transpose matmul weights to (in, out),
    fold the softmax scale into the Q projection, cast matmul weights to the
    compute dtype, and pack the six small (1, E) vectors into one (6, E) array."""
    E = params["wo"].shape[0]
    scale = (E // num_heads) ** -0.5

    wqkv_t = jnp.asarray(params["wqkv"], jnp.float32).T          # (E, 3E)
    wqkv_t = wqkv_t.at[:, :E].multiply(scale)
    bqkv = jnp.asarray(params["bqkv"], jnp.float32)
    bqkv = bqkv.at[:, :E].multiply(scale)

    vecs = jnp.concatenate([
        jnp.asarray(params["bo"], jnp.float32),
        jnp.asarray(params["g1"], jnp.float32),
        jnp.asarray(params["be1"], jnp.float32),
        jnp.asarray(params["b2"], jnp.float32),
        jnp.asarray(params["g2"], jnp.float32),
        jnp.asarray(params["be2"], jnp.float32),
    ], axis=0)                                                   # (6, E)

    return [
        wqkv_t.astype(compute_dtype),                                       # 0: wqkv (E,3E)
        bqkv,                                                               # 1: bqkv (1,3E)
        jnp.asarray(params["wo"], jnp.float32).T.astype(compute_dtype),     # 2: wo   (E,E)
        jnp.asarray(params["w1"], jnp.float32).T.astype(compute_dtype),     # 3: w1   (E,FF)
        jnp.asarray(params["b1"], jnp.float32),                             # 4: b1   (1,FF)
        jnp.asarray(params["w2"], jnp.float32).T.astype(compute_dtype),     # 5: w2   (FF,E)
        vecs,                                                               # 6: vecs (6,E)
    ]


def encoder_block(x, params, num_heads, *, batch_block=None,
                  compute_dtype=jnp.bfloat16, single_buffer_weights=False):
    B, S, E = x.shape
    if batch_block is None:
        # Largest batch tile that still leaves >= 2 "parallel" grid steps, so both
        # v7x TensorCores are fed (a no-op on single-core v5e/v6e chips).
        batch_block = max(1, B // 2)
    while B % batch_block:
        batch_block -= 1
    grid = (B // batch_block,)

    param_list = _prepare_params(params, num_heads, compute_dtype)
    weight_idx = {0, 2, 3, 5}   # the big matmul weights (constant across the grid)

    def const_spec(arr, single_buffer):
        nd = arr.ndim
        index_map = lambda b: (0,) * nd
        if single_buffer:
            # Constant blocks are never re-DMA'd; single-buffering halves their VMEM
            # footprint (matters at real model sizes on v7x's 64 MiB VMEM).
            return pl.BlockSpec(arr.shape, index_map, pipeline_mode=pl.Buffered(1))
        return pl.BlockSpec(arr.shape, index_map)

    in_specs = [pl.BlockSpec((batch_block, S, E), lambda b: (b, 0, 0))]
    in_specs += [const_spec(p, single_buffer_weights and i in weight_idx)
                 for i, p in enumerate(param_list)]
    out_spec = pl.BlockSpec((batch_block, S, E), lambda b: (b, 0, 0))

    kernel = functools.partial(_encoder_block_kernel,
                               num_heads=num_heads, compute_dtype=compute_dtype)

    return pl.pallas_call(
        kernel,
        out_shape=jax.ShapeDtypeStruct((B, S, E), x.dtype),
        grid=grid,
        in_specs=in_specs,
        out_specs=out_spec,
        compiler_params=pltpu.CompilerParams(
            dimension_semantics=("parallel",),
            vmem_limit_bytes=64 * 1024 * 1024,
        ),
    )(x, *param_list)


def encoder_block_ref(x, params, num_heads):
    """Pure-JAX f32 reference mirroring torch.nn.MultiheadAttention + the rest."""
    B, S, E = x.shape
    Dh = E // num_heads
    qkv = jnp.einsum("bse,fe->bsf", x, params["wqkv"]) + params["bqkv"]
    q, k, v = jnp.split(qkv, 3, axis=-1)

    def heads(t):  # (B, S, E) -> (B, H, S, Dh)
        return t.reshape(B, S, num_heads, Dh).transpose(0, 2, 1, 3)

    qh, kh, vh = heads(q), heads(k), heads(v)
    scores = jnp.einsum("bhqd,bhkd->bhqk", qh, kh) / (Dh ** 0.5)
    p = jax.nn.softmax(scores, axis=-1)
    ctx = jnp.einsum("bhqk,bhkd->bhqd", p, vh).transpose(0, 2, 1, 3).reshape(B, S, E)
    attn = jnp.einsum("bse,fe->bsf", ctx, params["wo"]) + params["bo"]

    def ln(t, g, b, eps=1e-5):
        m = jnp.mean(t, axis=-1, keepdims=True)
        var = jnp.mean((t - m) ** 2, axis=-1, keepdims=True)
        return (t - m) / jnp.sqrt(var + eps) * g + b

    x = ln(x + attn, params["g1"], params["be1"])
    h = jnp.maximum(jnp.einsum("bse,fe->bsf", x, params["w1"]) + params["b1"], 0.0)
    ff = jnp.einsum("bsf,ef->bse", h, params["w2"]) + params["b2"]
    return ln(x + ff, params["g2"], params["be2"])


if __name__ == "__main__":
    B, S, num_heads = 2, 8, 4
    E = 128                      # multiple of 128 -> lane-dense slices and stores
    FF = 4 * E                   # dim_feedforward default

    key = jax.random.PRNGKey(0)
    ks = jax.random.split(key, 9)

    params = {
        "wqkv": jax.random.normal(ks[0], (3 * E, E), jnp.float32) * (E ** -0.5),
        "bqkv": jax.random.normal(ks[1], (1, 3 * E), jnp.float32) * 0.02,
        "wo":   jax.random.normal(ks[2], (E, E), jnp.float32) * (E ** -0.5),
        "bo":   jax.random.normal(ks[3], (1, E), jnp.float32) * 0.02,
        "g1":   jnp.ones((1, E), jnp.float32),
        "be1":  jnp.zeros((1, E), jnp.float32),
        "w1":   jax.random.normal(ks[4], (FF, E), jnp.float32) * (E ** -0.5),
        "b1":   jax.random.normal(ks[5], (1, FF), jnp.float32) * 0.02,
        "w2":   jax.random.normal(ks[6], (E, FF), jnp.float32) * (FF ** -0.5),
        "b2":   jax.random.normal(ks[7], (1, E), jnp.float32) * 0.02,
        "g2":   jnp.ones((1, E), jnp.float32),
        "be2":  jnp.zeros((1, E), jnp.float32),
    }

    x = jax.random.normal(ks[8], (B, S, E), jnp.float32)
    ref = encoder_block_ref(x, params, num_heads)

    # f32-compute run: tight correctness check of the kernel math.
    out_f32 = jax.block_until_ready(
        encoder_block(x, params, num_heads, compute_dtype=jnp.float32))
    assert out_f32.shape == (B, S, E)
    err_f32 = float(jnp.max(jnp.abs(out_f32 - ref)))
    assert err_f32 < 2e-2, f"f32-compute kernel mismatch vs reference: {err_f32}"

    # bf16-compute run (default / perf configuration): MXU-native inputs, f32 accum.
    out_bf16 = jax.block_until_ready(encoder_block(x, params, num_heads))
    assert out_bf16.shape == (B, S, E)
    err_bf16 = float(jnp.max(jnp.abs(out_bf16 - ref)))
    assert err_bf16 < 1e-1, f"bf16-compute kernel mismatch vs reference: {err_bf16}"

    print("KERNEL_OK")
</pallas_src>

<mosaic_0001>
module attributes {stable_mosaic.version = 11 : i64} {
  func.func @_encoder_block_kernel(%arg0: i32, %arg1: memref<1x8x128xf32, #tpu.memory_space<vmem>>, %arg2: memref<128x384xf32, #tpu.memory_space<vmem>>, %arg3: memref<1x384xf32, #tpu.memory_space<vmem>>, %arg4: memref<128x128xf32, #tpu.memory_space<vmem>>, %arg5: memref<128x512xf32, #tpu.memory_space<vmem>>, %arg6: memref<1x512xf32, #tpu.memory_space<vmem>>, %arg7: memref<512x128xf32, #tpu.memory_space<vmem>>, %arg8: memref<6x128xf32, #tpu.memory_space<vmem>>, %arg9: memref<1x8x128xf32, #tpu.memory_space<vmem>>) attributes {dimension_semantics = [#tpu.dimension_semantics<parallel>], iteration_bounds = array<i64: 2>, scalar_prefetch = 0 : i64, scratch_operands = 0 : i64, tpu.core_type = #tpu.core_type<tc>, window_params = [{transform_indices = @transform_0, window_bounds = array<i64: 1, 8, 128>}, {pipeline_mode = #tpu.pipeline_mode<synchronous>, transform_indices = @transform_1, window_bounds = array<i64: 128, 384>}, {pipeline_mode = #tpu.pipeline_mode<synchronous>, transform_indices = @transform_2, window_bounds = array<i64: 1, 384>}, {pipeline_mode = #tpu.pipeline_mode<synchronous>, transform_indices = @transform_3, window_bounds = array<i64: 128, 128>}, {pipeline_mode = #tpu.pipeline_mode<synchronous>, transform_indices = @transform_4, window_bounds = array<i64: 128, 512>}, {pipeline_mode = #tpu.pipeline_mode<synchronous>, transform_indices = @transform_5, window_bounds = array<i64: 1, 512>}, {pipeline_mode = #tpu.pipeline_mode<synchronous>, transform_indices = @transform_6, window_bounds = array<i64: 512, 128>}, {pipeline_mode = #tpu.pipeline_mode<synchronous>, transform_indices = @transform_7, window_bounds = array<i64: 6, 128>}, {transform_indices = @transform_8, window_bounds = array<i64: 1, 8, 128>}]} {
    %c0 = arith.constant 0 : index
    %c0_0 = arith.constant 0 : index
    %0 = vector.load %arg8[%c0, %c0_0] : memref<6x128xf32, #tpu.memory_space<vmem>>, vector<6x128xf32>
    %1 = vector.extract_strided_slice %0 {offsets = [0, 0], sizes = [1, 128], strides = [1, 1]} : vector<6x128xf32> to vector<1x128xf32>
    %2 = vector.extract_strided_slice %0 {offsets = [1, 0], sizes = [1, 128], strides = [1, 1]} : vector<6x128xf32> to vector<1x128xf32>
    %3 = vector.extract_strided_slice %0 {offsets = [2, 0], sizes = [1, 128], strides = [1, 1]} : vector<6x128xf32> to vector<1x128xf32>
    %4 = vector.extract_strided_slice %0 {offsets = [3, 0], sizes = [1, 128], strides = [1, 1]} : vector<6x128xf32> to vector<1x128xf32>
    %5 = vector.extract_strided_slice %0 {offsets = [4, 0], sizes = [1, 128], strides = [1, 1]} : vector<6x128xf32> to vector<1x128xf32>
    %6 = vector.extract_strided_slice %0 {offsets = [5, 0], sizes = [1, 128], strides = [1, 1]} : vector<6x128xf32> to vector<1x128xf32>
    %c0_1 = arith.constant 0 : index
    %c0_2 = arith.constant 0 : index
    %c0_3 = arith.constant 0 : index
    %7 = vector.load %arg1[%c0_1, %c0_2, %c0_3] : memref<1x8x128xf32, #tpu.memory_space<vmem>>, vector<1x8x128xf32>
    %8 = vector.shape_cast %7 : vector<1x8x128xf32> to vector<8x128xf32>
    %c0_4 = arith.constant 0 : index
    %c0_5 = arith.constant 0 : index
    %9 = vector.load %arg2[%c0_4, %c0_5] : memref<128x384xf32, #tpu.memory_space<vmem>>, vector<128x384xf32>
    %cst = arith.constant dense<0.000000e+00> : vector<8x384xf32>
    %10 = tpu.matmul %8, %9, %cst {dimension_numbers = #tpu.dot_dimension_numbers<[1], [0], [0], [1], [0, 0, 1, 1], [], []>} : vector<8x128xf32>, vector<128x384xf32>, vector<8x384xf32> -> vector<8x384xf32>
    %c0_6 = arith.constant 0 : index
    %c0_7 = arith.constant 0 : index
    %11 = vector.load %arg3[%c0_6, %c0_7] : memref<1x384xf32, #tpu.memory_space<vmem>>, vector<1x384xf32>
    %12 = vector.broadcast %11 : vector<1x384xf32> to vector<8x384xf32>
    %13 = arith.addf %10, %12 : vector<8x384xf32>
    %14 = vector.extract_strided_slice %13 {offsets = [0, 0], sizes = [8, 32], strides = [1, 1]} : vector<8x384xf32> to vector<8x32xf32>
    %15 = vector.extract_strided_slice %13 {offsets = [0, 32], sizes = [8, 32], strides = [1, 1]} : vector<8x384xf32> to vector<8x32xf32>
    %16 = vector.extract_strided_slice %13 {offsets = [0, 64], sizes = [8, 32], strides = [1, 1]} : vector<8x384xf32> to vector<8x32xf32>
    %17 = vector.extract_strided_slice %13 {offsets = [0, 96], sizes = [8, 32], strides = [1, 1]} : vector<8x384xf32> to vector<8x32xf32>
    %18 = vector.shape_cast %14 : vector<8x32xf32> to vector<1x8x32xf32>
    %19 = vector.shape_cast %15 : vector<8x32xf32> to vector<1x8x32xf32>
    %20 = vector.shape_cast %16 : vector<8x32xf32> to vector<1x8x32xf32>
    %21 = vector.shape_cast %17 : vector<8x32xf32> to vector<1x8x32xf32>
    %22 = tpu.concatenate %18, %19, %20, %21 in 0 : vector<1x8x32xf32>, vector<1x8x32xf32>, vector<1x8x32xf32>, vector<1x8x32xf32> -> vector<4x8x32xf32>
    %23 = vector.extract_strided_slice %13 {offsets = [0, 128], sizes = [8, 32], strides = [1, 1]} : vector<8x384xf32> to vector<8x32xf32>
    %24 = vector.extract_strided_slice %13 {offsets = [0, 160], sizes = [8, 32], strides = [1, 1]} : vector<8x384xf32> to vector<8x32xf32>
    %25 = vector.extract_strided_slice %13 {offsets = [0, 192], sizes = [8, 32], strides = [1, 1]} : vector<8x384xf32> to vector<8x32xf32>
    %26 = vector.extract_strided_slice %13 {offsets = [0, 224], sizes = [8, 32], strides = [1, 1]} : vector<8x384xf32> to vector<8x32xf32>
    %27 = vector.shape_cast %23 : vector<8x32xf32> to vector<1x8x32xf32>
    %28 = vector.shape_cast %24 : vector<8x32xf32> to vector<1x8x32xf32>
    %29 = vector.shape_cast %25 : vector<8x32xf32> to vector<1x8x32xf32>
    %30 = vector.shape_cast %26 : vector<8x32xf32> to vector<1x8x32xf32>
    %31 = tpu.concatenate %27, %28, %29, %30 in 0 : vector<1x8x32xf32>, vector<1x8x32xf32>, vector<1x8x32xf32>, vector<1x8x32xf32> -> vector<4x8x32xf32>
    %32 = vector.extract_strided_slice %13 {offsets = [0, 256], sizes = [8, 32], strides = [1, 1]} : vector<8x384xf32> to vector<8x32xf32>
    %33 = vector.extract_strided_slice %13 {offsets = [0, 288], sizes = [8, 32], strides = [1, 1]} : vector<8x384xf32> to vector<8x32xf32>
    %34 = vector.extract_strided_slice %13 {offsets = [0, 320], sizes = [8, 32], strides = [1, 1]} : vector<8x384xf32> to vector<8x32xf32>
    %35 = vector.extract_strided_slice %13 {offsets = [0, 352], sizes = [8, 32], strides = [1, 1]} : vector<8x384xf32> to vector<8x32xf32>
    %36 = vector.shape_cast %32 : vector<8x32xf32> to vector<1x8x32xf32>
    %37 = vector.shape_cast %33 : vector<8x32xf32> to vector<1x8x32xf32>
    %38 = vector.shape_cast %34 : vector<8x32xf32> to vector<1x8x32xf32>
    %39 = vector.shape_cast %35 : vector<8x32xf32> to vector<1x8x32xf32>
    %40 = tpu.concatenate %36, %37, %38, %39 in 0 : vector<1x8x32xf32>, vector<1x8x32xf32>, vector<1x8x32xf32>, vector<1x8x32xf32> -> vector<4x8x32xf32>
    "tpu.trace_start"() <{level = 10 : i32, message = "bqd,bkd->bqk"}> : () -> ()
    %cst_8 = arith.constant dense<0.000000e+00> : vector<4x8x8xf32>
    %41 = tpu.matmul %22, %31, %cst_8 {dimension_numbers = #tpu.dot_dimension_numbers<[2], [2], [1], [1], [0, 0, 0, 1, 1, 1], [0], [0]>} : vector<4x8x32xf32>, vector<4x8x32xf32>, vector<4x8x8xf32> -> vector<4x8x8xf32>
    "tpu.trace_stop"() : () -> ()
    %cst_9 = arith.constant dense<0xFF800000> : vector<4x8xf32>
    %42 = vector.multi_reduction <maximumf>, %41, %cst_9 [2] : vector<4x8x8xf32> to vector<4x8xf32>
    %43 = vector.shape_cast %42 : vector<4x8xf32> to vector<4x8x1xf32>
    %44 = vector.broadcast %43 : vector<4x8x1xf32> to vector<4x8x8xf32>
    %45 = arith.subf %41, %44 : vector<4x8x8xf32>
    %46 = math.exp %45 : vector<4x8x8xf32>
    %cst_10 = arith.constant dense<0.000000e+00> : vector<4x8xf32>
    %47 = vector.multi_reduction <add>, %46, %cst_10 [2] : vector<4x8x8xf32> to vector<4x8xf32>
    %48 = vector.shape_cast %47 : vector<4x8xf32> to vector<4x8x1xf32>
    %49 = tpu.reciprocal %48 {approx = true} : vector<4x8x1xf32> -> vector<4x8x1xf32>
    %50 = vector.broadcast %49 : vector<4x8x1xf32> to vector<4x8x8xf32>
    %51 = arith.mulf %46, %50 : vector<4x8x8xf32>
    "tpu.trace_start"() <{level = 10 : i32, message = "bqk,bkd->bqd"}> : () -> ()
    %cst_11 = arith.constant dense<0.000000e+00> : vector<4x8x32xf32>
    %52 = tpu.matmul %51, %40, %cst_11 {dimension_numbers = #tpu.dot_dimension_numbers<[2], [1], [1], [2], [0, 0, 0, 1, 1, 2], [0], [0]>} : vector<4x8x8xf32>, vector<4x8x32xf32>, vector<4x8x32xf32> -> vector<4x8x32xf32>
    "tpu.trace_stop"() : () -> ()
    %53 = vector.extract_strided_slice %52 {offsets = [0, 0, 0], sizes = [1, 8, 32], strides = [1, 1, 1]} : vector<4x8x32xf32> to vector<1x8x32xf32>
    %54 = vector.shape_cast %53 : vector<1x8x32xf32> to vector<8x32xf32>
    %55 = vector.extract_strided_slice %52 {offsets = [1, 0, 0], sizes = [1, 8, 32], strides = [1, 1, 1]} : vector<4x8x32xf32> to vector<1x8x32xf32>
    %56 = vector.shape_cast %55 : vector<1x8x32xf32> to vector<8x32xf32>
    %57 = vector.extract_strided_slice %52 {offsets = [2, 0, 0], sizes = [1, 8, 32], strides = [1, 1, 1]} : vector<4x8x32xf32> to vector<1x8x32xf32>
    %58 = vector.shape_cast %57 : vector<1x8x32xf32> to vector<8x32xf32>
    %59 = vector.extract_strided_slice %52 {offsets = [3, 0, 0], sizes = [1, 8, 32], strides = [1, 1, 1]} : vector<4x8x32xf32> to vector<1x8x32xf32>
    %60 = vector.shape_cast %59 : vector<1x8x32xf32> to vector<8x32xf32>
    %61 = tpu.concatenate %54, %56, %58, %60 in 1 : vector<8x32xf32>, vector<8x32xf32>, vector<8x32xf32>, vector<8x32xf32> -> vector<8x128xf32>
    %c0_12 = arith.constant 0 : index
    %c0_13 = arith.constant 0 : index
    %62 = vector.load %arg4[%c0_12, %c0_13] : memref<128x128xf32, #tpu.memory_space<vmem>>, vector<128x128xf32>
    %cst_14 = arith.constant dense<0.000000e+00> : vector<8x128xf32>
    %63 = tpu.matmul %61, %62, %cst_14 {dimension_numbers = #tpu.dot_dimension_numbers<[1], [0], [0], [1], [0, 0, 1, 1], [], []>} : vector<8x128xf32>, vector<128x128xf32>, vector<8x128xf32> -> vector<8x128xf32>
    %64 = vector.broadcast %1 : vector<1x128xf32> to vector<8x128xf32>
    %65 = arith.addf %63, %64 : vector<8x128xf32>
    %66 = arith.addf %8, %65 : vector<8x128xf32>
    %cst_15 = arith.constant dense<0.000000e+00> : vector<8xf32>
    %67 = vector.multi_reduction <add>, %66, %cst_15 [1] : vector<8x128xf32> to vector<8xf32>
    %68 = vector.shape_cast %67 : vector<8xf32> to vector<8x1xf32>
    %cst_16 = arith.constant 1.280000e+02 : f32
    %69 = vector.broadcast %cst_16 : f32 to vector<8x1xf32>
    %70 = arith.divf %68, %69 : vector<8x1xf32>
    %71 = vector.broadcast %70 : vector<8x1xf32> to vector<8x128xf32>
    %72 = arith.subf %66, %71 : vector<8x128xf32>
    %73 = arith.mulf %72, %72 : vector<8x128xf32>
    %cst_17 = arith.constant dense<0.000000e+00> : vector<8xf32>
    %74 = vector.multi_reduction <add>, %73, %cst_17 [1] : vector<8x128xf32> to vector<8xf32>
    %75 = vector.shape_cast %74 : vector<8xf32> to vector<8x1xf32>
    %cst_18 = arith.constant 1.280000e+02 : f32
    %76 = vector.broadcast %cst_18 : f32 to vector<8x1xf32>
    %77 = arith.divf %75, %76 : vector<8x1xf32>
    %78 = vector.broadcast %70 : vector<8x1xf32> to vector<8x128xf32>
    %79 = arith.subf %66, %78 : vector<8x128xf32>
    %cst_19 = arith.constant 9.99999974E-6 : f32
    %80 = vector.broadcast %cst_19 : f32 to vector<8x1xf32>
    %81 = arith.addf %77, %80 : vector<8x1xf32>
    %82 = math.rsqrt %81 : vector<8x1xf32>
    %83 = vector.broadcast %82 : vector<8x1xf32> to vector<8x128xf32>
    %84 = arith.mulf %79, %83 : vector<8x128xf32>
    %85 = vector.broadcast %2 : vector<1x128xf32> to vector<8x128xf32>
    %86 = arith.mulf %84, %85 : vector<8x128xf32>
    %87 = vector.broadcast %3 : vector<1x128xf32> to vector<8x128xf32>
    %88 = arith.addf %86, %87 : vector<8x128xf32>
    %c0_20 = arith.constant 0 : index
    %c0_21 = arith.constant 0 : index
    %89 = vector.load %arg5[%c0_20, %c0_21] : memref<128x512xf32, #tpu.memory_space<vmem>>, vector<128x512xf32>
    %cst_22 = arith.constant dense<0.000000e+00> : vector<8x512xf32>
    %90 = tpu.matmul %88, %89, %cst_22 {dimension_numbers = #tpu.dot_dimension_numbers<[1], [0], [0], [1], [0, 0, 1, 1], [], []>} : vector<8x128xf32>, vector<128x512xf32>, vector<8x512xf32> -> vector<8x512xf32>
    %c0_23 = arith.constant 0 : index
    %c0_24 = arith.constant 0 : index
    %91 = vector.load %arg6[%c0_23, %c0_24] : memref<1x512xf32, #tpu.memory_space<vmem>>, vector<1x512xf32>
    %92 = vector.broadcast %91 : vector<1x512xf32> to vector<8x512xf32>
    %93 = arith.addf %90, %92 : vector<8x512xf32>
    %cst_25 = arith.constant 0.000000e+00 : f32
    %94 = vector.broadcast %cst_25 : f32 to vector<8x512xf32>
    %95 = arith.maximumf %93, %94 : vector<8x512xf32>
    %c0_26 = arith.constant 0 : index
    %c0_27 = arith.constant 0 : index
    %96 = vector.load %arg7[%c0_26, %c0_27] : memref<512x128xf32, #tpu.memory_space<vmem>>, vector<512x128xf32>
    %cst_28 = arith.constant dense<0.000000e+00> : vector<8x128xf32>
    %97 = tpu.matmul %95, %96, %cst_28 {dimension_numbers = #tpu.dot_dimension_numbers<[1], [0], [0], [1], [0, 0, 1, 1], [], []>} : vector<8x512xf32>, vector<512x128xf32>, vector<8x128xf32> -> vector<8x128xf32>
    %98 = vector.broadcast %4 : vector<1x128xf32> to vector<8x128xf32>
    %99 = arith.addf %97, %98 : vector<8x128xf32>
    %100 = arith.addf %88, %99 : vector<8x128xf32>
    %cst_29 = arith.constant dense<0.000000e+00> : vector<8xf32>
    %101 = vector.multi_reduction <add>, %100, %cst_29 [1] : vector<8x128xf32> to vector<8xf32>
    %102 = vector.shape_cast %101 : vector<8xf32> to vector<8x1xf32>
    %cst_30 = arith.constant 1.280000e+02 : f32
    %103 = vector.broadcast %cst_30 : f32 to vector<8x1xf32>
    %104 = arith.divf %102, %103 : vector<8x1xf32>
    %105 = vector.broadcast %104 : vector<8x1xf32> to vector<8x128xf32>
    %106 = arith.subf %100, %105 : vector<8x128xf32>
    %107 = arith.mulf %106, %106 : vector<8x128xf32>
    %cst_31 = arith.constant dense<0.000000e+00> : vector<8xf32>
    %108 = vector.multi_reduction <add>, %107, %cst_31 [1] : vector<8x128xf32> to vector<8xf32>
    %109 = vector.shape_cast %108 : vector<8xf32> to vector<8x1xf32>
    %cst_32 = arith.constant 1.280000e+02 : f32
    %110 = vector.broadcast %cst_32 : f32 to vector<8x1xf32>
    %111 = arith.divf %109, %110 : vector<8x1xf32>
    %112 = vector.broadcast %104 : vector<8x1xf32> to vector<8x128xf32>
    %113 = arith.subf %100, %112 : vector<8x128xf32>
    %cst_33 = arith.constant 9.99999974E-6 : f32
    %114 = vector.broadcast %cst_33 : f32 to vector<8x1xf32>
    %115 = arith.addf %111, %114 : vector<8x1xf32>
    %116 = math.rsqrt %115 : vector<8x1xf32>
    %117 = vector.broadcast %116 : vector<8x1xf32> to vector<8x128xf32>
    %118 = arith.mulf %113, %117 : vector<8x128xf32>
    %119 = vector.broadcast %5 : vector<1x128xf32> to vector<8x128xf32>
    %120 = arith.mulf %118, %119 : vector<8x128xf32>
    %121 = vector.broadcast %6 : vector<1x128xf32> to vector<8x128xf32>
    %122 = arith.addf %120, %121 : vector<8x128xf32>
    %123 = vector.shape_cast %122 : vector<8x128xf32> to vector<1x8x128xf32>
    %c0_34 = arith.constant 0 : index
    %c0_35 = arith.constant 0 : index
    %c0_36 = arith.constant 0 : index
    %124 = vector.load %arg9[%c0_34, %c0_35, %c0_36] : memref<1x8x128xf32, #tpu.memory_space<vmem>>, vector<1x8x128xf32>
    tpu.vector_store %arg9[%c0_34, %c0_35, %c0_36], %123 {strides = array<i32>} : memref<1x8x128xf32, #tpu.memory_space<vmem>>, vector<1x8x128xf32>,
    return
  }
  func.func @transform_0(%arg0: i32) -> (i32, i32, i32) {
    %c0_i32 = arith.constant 0 : i32
    %c0_i32_0 = arith.constant 0 : i32
    %c0_i32_1 = arith.constant 0 : i32
    return %arg0, %c0_i32, %c0_i32_0 : i32, i32, i32
  }
  func.func @transform_1(%arg0: i32) -> (i32, i32) {
    %c0_i32 = arith.constant 0 : i32
    %c0_i32_0 = arith.constant 0 : i32
    %c0_i32_1 = arith.constant 0 : i32
    return %c0_i32, %c0_i32_0 : i32, i32
  }
  func.func @transform_2(%arg0: i32) -> (i32, i32) {
    %c0_i32 = arith.constant 0 : i32
    %c0_i32_0 = arith.constant 0 : i32
    %c0_i32_1 = arith.constant 0 : i32
    return %c0_i32, %c0_i32_0 : i32, i32
  }
  func.func @transform_3(%arg0: i32) -> (i32, i32) {
    %c0_i32 = arith.constant 0 : i32
    %c0_i32_0 = arith.constant 0 : i32
    %c0_i32_1 = arith.constant 0 : i32
    return %c0_i32, %c0_i32_0 : i32, i32
  }
  func.func @transform_4(%arg0: i32) -> (i32, i32) {
    %c0_i32 = arith.constant 0 : i32
    %c0_i32_0 = arith.constant 0 : i32
    %c0_i32_1 = arith.constant 0 : i32
    return %c0_i32, %c0_i32_0 : i32, i32
  }
  func.func @transform_5(%arg0: i32) -> (i32, i32) {
    %c0_i32 = arith.constant 0 : i32
    %c0_i32_0 = arith.constant 0 : i32
    %c0_i32_1 = arith.constant 0 : i32
    return %c0_i32, %c0_i32_0 : i32, i32
  }
  func.func @transform_6(%arg0: i32) -> (i32, i32) {
    %c0_i32 = arith.constant 0 : i32
    %c0_i32_0 = arith.constant 0 : i32
    %c0_i32_1 = arith.constant 0 : i32
    return %c0_i32, %c0_i32_0 : i32, i32
  }
  func.func @transform_7(%arg0: i32) -> (i32, i32) {
    %c0_i32 = arith.constant 0 : i32
    %c0_i32_0 = arith.constant 0 : i32
    %c0_i32_1 = arith.constant 0 : i32
    return %c0_i32, %c0_i32_0 : i32, i32
  }
  func.func @transform_8(%arg0: i32) -> (i32, i32, i32) {
    %c0_i32 = arith.constant 0 : i32
    %c0_i32_0 = arith.constant 0 : i32
    %c0_i32_1 = arith.constant 0 : i32
    return %arg0, %c0_i32, %c0_i32_0 : i32, i32, i32
  }
}

</mosaic_0001>

<llo_original>
// kernel: tpu_custom_call.1
$region0: #{tpu_custom_call.1}
  #allocation0 [shape = 'u32[]', space=smem, size = 0x4, offset = 0x4, fixed_abs, tag = 'smem constant byte address 0x4 - core index']
  #allocation1 [shape = 'u32[144,128]{1,0:T(1,128)}', space=vmem, size = 0x12000, scoped, tag = 'internal scratch']
  %s0 = inlined_call_operand.hbm [shape: f32[2,8,128], index: 0, kind: input, shape index: {}]
  %s1 = inlined_call_operand.hbm [shape: f32[128,384], index: 1, kind: input, shape index: {}]
  %s2 = inlined_call_operand.hbm [shape: f32[1,384], index: 2, kind: input, shape index: {}]
  %s3 = inlined_call_operand.hbm [shape: f32[128,128], index: 3, kind: input, shape index: {}]
  %s4 = inlined_call_operand.hbm [shape: f32[128,512], index: 4, kind: input, shape index: {}]
  %s5 = inlined_call_operand.vmem [shape: f32[1,512], index: 5, kind: input, shape index: {}]
  %s6 = inlined_call_operand.hbm [shape: f32[512,128], index: 6, kind: input, shape index: {}]
  %s7 = inlined_call_operand.vmem [shape: f32[6,128], index: 7, kind: input, shape index: {}]
  %s8 = inlined_call_operand.hbm [shape: f32[2,8,128], index: 8, kind: output, shape index: {}]
  %s9 = sld [smem:[#allocation0]]
  $region89: #{tpu_custom_call.1} parent=0
    _
  %s11 = ssub.s32 1, %s9
  %s12 = scalar_select 0, %s11, %s9
  $region1: #{tpu_custom_call.1} parent=0
    #allocation2 [shape = 'u8[8192]{0}', space=vmem, size = 0x2000, scoped, tag = 'input window, operand 0']
    #allocation3 [shape = 's32[2]{0}', space=sflag, size = 0x8, scoped, tag = 'scoped memory for tpu_custom_call.1']
    #allocation4 [shape = 's32[2]{0}', space=sflag, size = 0x8, scoped, tag = 'scoped memory for tpu_custom_call.1']
    #allocation5 [shape = 'u8[196608]{0}', space=vmem, size = 0x30000, scoped, tag = 'input window, operand 1, single buffered']
    #allocation6 [shape = 's32[1]{0}', space=sflag, size = 0x4, scoped, tag = 'scoped memory for tpu_custom_call.1']
    #allocation7 [shape = 'u8[1536]{0}', space=vmem, size = 0x800, scoped, tag = 'input window, operand 2, single buffered']
    #allocation8 [shape = 'u8[65536]{0}', space=vmem, size = 0x10000, scoped, tag = 'input window, operand 3, single buffered']
    #allocation9 [shape = 's32[1]{0}', space=sflag, size = 0x4, scoped, tag = 'scoped memory for tpu_custom_call.1']
    #allocation10 [shape = 'u8[262144]{0}', space=vmem, size = 0x40000, scoped, tag = 'input window, operand 4, single buffered']
    #allocation11 [shape = 'u8[262144]{0}', space=vmem, size = 0x40000, scoped, tag = 'input window, operand 6, single buffered']
    #allocation12 [shape = 's32[1]{0}', space=sflag, size = 0x4, scoped, tag = 'scoped memory for tpu_custom_call.1']
    #allocation13 [shape = 'u8[8192]{0}', space=vmem, size = 0x2000, scoped, tag = 'output window, operand 0']
    %13 = vsyncpa [#allocation3], 0
    %s14 = scalar_lea.sflag [#allocation3], 1
    %15 = vsyncpa %s14, 0
    %16 = vsyncpa [#allocation6], 0
    %17 = vsyncpa [#allocation9], 0
    %18 = vsyncpa [#allocation12], 0
    %19 = vsyncpa [#allocation4], 0
    %s20 = scalar_lea.sflag [#allocation4], 1
    %21 = vsyncpa %s20, 0
    loop: start=0, step=1, limit=4
    $region2: #{tpu_custom_call.1} parent=1 // loop_pre_header
      _
    $region3: #{tpu_custom_call.1} parent=1 // loop_header
      %s23 = sphi 0, %s27
      %p24 = scmp.ge.s32.totalorder %s23, 4
      %s33 = sphi 0, %s35
      %s36 = sphi 0, %s33
      %s37 = sphi 0, %s36
      %s53 = sphi 0, %s37
      %s57 = sphi 0, %s57
      %s59 = sphi 0, %s57
      %s60 = sphi 0, %s59
      %s74 = sphi 0, %s60
      %s78 = sphi 0, %s78
      %s80 = sphi 0, %s78
      %s81 = sphi 0, %s80
      %s95 = sphi 0, %s81
      %s99 = sphi 0, %s99
      %s101 = sphi 0, %s99
      %s102 = sphi 0, %s101
      %s116 = sphi 0, %s102
      %s120 = sphi 0, %s120
      %s122 = sphi 0, %s120
      %s123 = sphi 0, %s122
      %s137 = sphi 0, %s123
      %s141 = sphi 0, %s141
      %s143 = sphi 0, %s141
      %s144 = sphi 0, %s143
      %s158 = sphi 0, %s144
      %s162 = sphi 0, %s162
      %s164 = sphi 0, %s162
      %s165 = sphi 0, %s164
      %s179 = sphi 0, %s165
      %s183 = sphi 0, %s183
      %s185 = sphi 0, %s183
      %s186 = sphi 0, %s185
      %s200 = sphi 0, %s186
      %s206 = sphi 0, %s208
      %s209 = sphi 0, %s206
      %s210 = sphi 0, %s209
      %s226 = sphi 0, %s210
    $region4: #{tpu_custom_call.1} parent=1 // loop_header_branch
      %26 = sbr.rel (%p24) target = $region8
    $region5: #{tpu_custom_call.1} parent=1 // loop_body
      %s28 = ssub.s32 %s23, 1
      %s29 = ssub.s32 %s23, 2
      %s30 = sadd.s32 %s23, 1
      %s31 = ssub.s32 %s23, %s30
      %p32 = scmp.eq.s32.totalorder %s31, 0
      %s34 = sadd.s32 %s33, 1
      %s35 = scalar_select %p32, %s33, %s34
      %p38 = pneg %p32
      %p39 = scmp.eq.s32.totalorder %s23, 1
      %p40 = por %p38, %p39
      %p41 = scmp.ne.s32.totalorder %s33, %s36
      %p42 = scmp.eq.s32.totalorder %s23, 0
      %p43 = por %p41, %p42
      %p44 = scmp.ne.s32.totalorder %s33, %s36
      %p45 = scmp.eq.s32.totalorder %s28, 1
      %p46 = por %p44, %p45
      %p47 = scmp.ne.s32.totalorder %s36, %s37
      %p48 = scmp.eq.s32.totalorder %s28, 0
      %p49 = por %p47, %p48
      %p50 = scmp.ne.s32.totalorder %s36, %s37
      %p51 = scmp.eq.s32.totalorder %s29, 1
      %p52 = por %p50, %p51
      %p54 = scmp.ne.s32.totalorder %s37, %s53
      %p55 = scmp.eq.s32.totalorder %s29, 0
      %p56 = por %p54, %p55
      %s58 = sadd.s32 %s57, 1
      %p61 = scmp.eq.s32.totalorder %s23, 1
      %p62 = scmp.ne.s32.totalorder %s57, %s59
      %p63 = scmp.eq.s32.totalorder %s23, 0
      %p64 = por %p62, %p63
      %p65 = scmp.ne.s32.totalorder %s57, %s59
      %p66 = scmp.eq.s32.totalorder %s28, 1
      %p67 = por %p65, %p66
      %p68 = scmp.ne.s32.totalorder %s59, %s60
      %p69 = scmp.eq.s32.totalorder %s28, 0
      %p70 = por %p68, %p69
      %p71 = scmp.ne.s32.totalorder %s59, %s60
      %p72 = scmp.eq.s32.totalorder %s29, 1
      %p73 = por %p71, %p72
      %p75 = scmp.ne.s32.totalorder %s60, %s74
      %p76 = scmp.eq.s32.totalorder %s29, 0
      %p77 = por %p75, %p76
      %s79 = sadd.s32 %s78, 1
      %p82 = scmp.eq.s32.totalorder %s23, 1
      %p83 = scmp.ne.s32.totalorder %s78, %s80
      %p84 = scmp.eq.s32.totalorder %s23, 0
      %p85 = por %p83, %p84
      %p86 = scmp.ne.s32.totalorder %s78, %s80
      %p87 = scmp.eq.s32.totalorder %s28, 1
      %p88 = por %p86, %p87
      %p89 = scmp.ne.s32.totalorder %s80, %s81
      %p90 = scmp.eq.s32.totalorder %s28, 0
      %p91 = por %p89, %p90
      %p92 = scmp.ne.s32.totalorder %s80, %s81
      %p93 = scmp.eq.s32.totalorder %s29, 1
      %p94 = por %p92, %p93
      %p96 = scmp.ne.s32.totalorder %s81, %s95
      %p97 = scmp.eq.s32.totalorder %s29, 0
      %p98 = por %p96, %p97
      %s100 = sadd.s32 %s99, 1
      %p103 = scmp.eq.s32.totalorder %s23, 1
      %p104 = scmp.ne.s32.totalorder %s99, %s101
      %p105 = scmp.eq.s32.totalorder %s23, 0
      %p106 = por %p104, %p105
      %p107 = scmp.ne.s32.totalorder %s99, %s101
      %p108 = scmp.eq.s32.totalorder %s28, 1
      %p109 = por %p107, %p108
      %p110 = scmp.ne.s32.totalorder %s101, %s102
      %p111 = scmp.eq.s32.totalorder %s28, 0
      %p112 = por %p110, %p111
      %p113 = scmp.ne.s32.totalorder %s101, %s102
      %p114 = scmp.eq.s32.totalorder %s29, 1
      %p115 = por %p113, %p114
      %p117 = scmp.ne.s32.totalorder %s102, %s116
      %p118 = scmp.eq.s32.totalorder %s29, 0
      %p119 = por %p117, %p118
      %s121 = sadd.s32 %s120, 1
      %p124 = scmp.eq.s32.totalorder %s23, 1
      %p125 = scmp.ne.s32.totalorder %s120, %s122
      %p126 = scmp.eq.s32.totalorder %s23, 0
      %p127 = por %p125, %p126
      %p128 = scmp.ne.s32.totalorder %s120, %s122
      %p129 = scmp.eq.s32.totalorder %s28, 1
      %p130 = por %p128, %p129
      %p131 = scmp.ne.s32.totalorder %s122, %s123
      %p132 = scmp.eq.s32.totalorder %s28, 0
      %p133 = por %p131, %p132
      %p134 = scmp.ne.s32.totalorder %s122, %s123
      %p135 = scmp.eq.s32.totalorder %s29, 1
      %p136 = por %p134, %p135
      %p138 = scmp.ne.s32.totalorder %s123, %s137
      %p139 = scmp.eq.s32.totalorder %s29, 0
      %p140 = por %p138, %p139
      %s142 = sadd.s32 %s141, 1
      %p145 = scmp.eq.s32.totalorder %s23, 1
      %p146 = scmp.ne.s32.totalorder %s141, %s143
      %p147 = scmp.eq.s32.totalorder %s23, 0
      %p148 = por %p146, %p147
      %p149 = scmp.ne.s32.totalorder %s141, %s143
      %p150 = scmp.eq.s32.totalorder %s28, 1
      %p151 = por %p149, %p150
      %p152 = scmp.ne.s32.totalorder %s143, %s144
      %p153 = scmp.eq.s32.totalorder %s28, 0
      %p154 = por %p152, %p153
      %p155 = scmp.ne.s32.totalorder %s143, %s144
      %p156 = scmp.eq.s32.totalorder %s29, 1
      %p157 = por %p155, %p156
      %p159 = scmp.ne.s32.totalorder %s144, %s158
      %p160 = scmp.eq.s32.totalorder %s29, 0
      %p161 = por %p159, %p160
      %s163 = sadd.s32 %s162, 1
      %p166 = scmp.eq.s32.totalorder %s23, 1
      %p167 = scmp.ne.s32.totalorder %s162, %s164
      %p168 = scmp.eq.s32.totalorder %s23, 0
      %p169 = por %p167, %p168
      %p170 = scmp.ne.s32.totalorder %s162, %s164
      %p171 = scmp.eq.s32.totalorder %s28, 1
      %p172 = por %p170, %p171
      %p173 = scmp.ne.s32.totalorder %s164, %s165
      %p174 = scmp.eq.s32.totalorder %s28, 0
      %p175 = por %p173, %p174
      %p176 = scmp.ne.s32.totalorder %s164, %s165
      %p177 = scmp.eq.s32.totalorder %s29, 1
      %p178 = por %p176, %p177
      %p180 = scmp.ne.s32.totalorder %s165, %s179
      %p181 = scmp.eq.s32.totalorder %s29, 0
      %p182 = por %p180, %p181
      %s184 = sadd.s32 %s183, 1
      %p187 = scmp.eq.s32.totalorder %s23, 1
      %p188 = scmp.ne.s32.totalorder %s183, %s185
      %p189 = scmp.eq.s32.totalorder %s23, 0
      %p190 = por %p188, %p189
      %p191 = scmp.ne.s32.totalorder %s183, %s185
      %p192 = scmp.eq.s32.totalorder %s28, 1
      %p193 = por %p191, %p192
      %p194 = scmp.ne.s32.totalorder %s185, %s186
      %p195 = scmp.eq.s32.totalorder %s28, 0
      %p196 = por %p194, %p195
      %p197 = scmp.ne.s32.totalorder %s185, %s186
      %p198 = scmp.eq.s32.totalorder %s29, 1
      %p199 = por %p197, %p198
      %p201 = scmp.ne.s32.totalorder %s186, %s200
      %p202 = scmp.eq.s32.totalorder %s29, 0
      %p203 = por %p201, %p202
      %s204 = ssub.s32 %s23, %s30
      %p205 = scmp.eq.s32.totalorder %s204, 0
      %s207 = sadd.s32 %s206, 1
      %s208 = scalar_select %p205, %s206, %s207
      %p211 = pneg %p205
      %p212 = scmp.eq.s32.totalorder %s23, 1
      %p213 = por %p211, %p212
      %p214 = scmp.ne.s32.totalorder %s206, %s209
      %p215 = scmp.eq.s32.totalorder %s23, 0
      %p216 = por %p214, %p215
      %p217 = scmp.ne.s32.totalorder %s206, %s209
      %p218 = scmp.eq.s32.totalorder %s28, 1
      %p219 = por %p217, %p218
      %p220 = scmp.ne.s32.totalorder %s209, %s210
      %p221 = scmp.eq.s32.totalorder %s28, 0
      %p222 = por %p220, %p221
      %p223 = scmp.ne.s32.totalorder %s209, %s210
      %p224 = scmp.eq.s32.totalorder %s29, 1
      %p225 = por %p223, %p224
      %p227 = scmp.ne.s32.totalorder %s210, %s226
      %p228 = scmp.eq.s32.totalorder %s29, 0
      %p229 = por %p227, %p228
      %p230 = scmp.le.s32.totalorder 1, %s23
      %p231 = scmp.lt.s32.totalorder %s23, 3
      %p232 = pnand %p230, %p231
      %p233 = pneg %p232
      // Predicated region
      $region9: #{tpu_custom_call.1} parent=5 // pred_check
        _
      $region10: #{tpu_custom_call.1} parent=5 // pred_check_branch
        %235 = sbr.rel (%p232) target = $region12
      $region11: #{tpu_custom_call.1} parent=5 // pred_region
        %s236 = ssub.s32 %s23, 1
        // Predicated region
        $region13: #{tpu_custom_call.1} parent=11 // pred_check
          %p237 = pneg %p70
        $region14: #{tpu_custom_call.1} parent=11 // pred_check_branch
          %239 = sbr.rel (%p237) target = $region16
        $region15: #{tpu_custom_call.1} parent=11 // pred_region
          %s241 = ssub.s32 6144, 6144
          %242 = vsyncadd [#allocation6], %s241
          %s243 = sshll.u32 [#allocation5], 4
          %s244 = int_to_ptr.vmem [resolvable:$true] %s243
          %249 = dma.hbm_to_vmem [thread:$0]  %s1, 6144, %s244, [#allocation6], 384, 384, 24
        $region16: #{tpu_custom_call.1} parent=11 // pred_fallthru
          _
        // Predicated region
        $region17: #{tpu_custom_call.1} parent=11 // pred_check
          %p250 = pneg %p91
        $region18: #{tpu_custom_call.1} parent=11 // pred_check_branch
          %252 = sbr.rel (%p250) target = $region20
        $region19: #{tpu_custom_call.1} parent=11 // pred_region
          %s254 = ssub.s32 48, 48
          %255 = vsyncadd [#allocation6], %s254
          %s257 = sshll.u32 [#allocation7], 4
          %s258 = int_to_ptr.vmem [resolvable:$true] %s257
          %260 = dma.hbm_to_vmem [thread:$0]  %s2, 48, %s258, [#allocation6]
        $region20: #{tpu_custom_call.1} parent=11 // pred_fallthru
          _
        // Predicated region
        $region21: #{tpu_custom_call.1} parent=11 // pred_check
          %p261 = pneg %p112
        $region22: #{tpu_custom_call.1} parent=11 // pred_check_branch
          %263 = sbr.rel (%p261) target = $region24
        $region23: #{tpu_custom_call.1} parent=11 // pred_region
          %s265 = ssub.s32 2048, 2048
          %266 = vsyncadd [#allocation9], %s265
          %s267 = sshll.u32 [#allocation8], 4
          %s268 = int_to_ptr.vmem [resolvable:$true] %s267
          %273 = dma.hbm_to_vmem [thread:$0]  %s3, 2048, %s268, [#allocation9], 128, 128, 8
        $region24: #{tpu_custom_call.1} parent=11 // pred_fallthru
          _
        // Predicated region
        $region25: #{tpu_custom_call.1} parent=11 // pred_check
          %p274 = pneg %p133
        $region26: #{tpu_custom_call.1} parent=11 // pred_check_branch
          %276 = sbr.rel (%p274) target = $region28
        $region27: #{tpu_custom_call.1} parent=11 // pred_region
          %s278 = ssub.s32 8192, 8192
          %279 = vsyncadd [#allocation9], %s278
          %s280 = sshll.u32 [#allocation10], 4
          %s281 = int_to_ptr.vmem [resolvable:$true] %s280
          %286 = dma.hbm_to_vmem [thread:$0]  %s4, 8192, %s281, [#allocation9], 512, 512, 32
        $region28: #{tpu_custom_call.1} parent=11 // pred_fallthru
          _
        // Predicated region
        $region29: #{tpu_custom_call.1} parent=11 // pred_check
          %p287 = pneg %p154
        $region30: #{tpu_custom_call.1} parent=11 // pred_check_branch
          %289 = sbr.rel (%p287) target = $region32
        $region31: #{tpu_custom_call.1} parent=11 // pred_region
          _
        $region32: #{tpu_custom_call.1} parent=11 // pred_fallthru
          _
        // Predicated region
        $region33: #{tpu_custom_call.1} parent=11 // pred_check
          %p290 = pneg %p175
        $region34: #{tpu_custom_call.1} parent=11 // pred_check_branch
          %292 = sbr.rel (%p290) target = $region36
        $region35: #{tpu_custom_call.1} parent=11 // pred_region
          %s294 = ssub.s32 8192, 8192
          %295 = vsyncadd [#allocation12], %s294
          %s296 = sshll.u32 [#allocation11], 4
          %s297 = int_to_ptr.vmem [resolvable:$true] %s296
          %302 = dma.hbm_to_vmem [thread:$0]  %s6, 8192, %s297, [#allocation12], 128, 128, 8
        $region36: #{tpu_custom_call.1} parent=11 // pred_fallthru
          _
        // Predicated region
        $region37: #{tpu_custom_call.1} parent=11 // pred_check
          %p303 = pneg %p196
        $region38: #{tpu_custom_call.1} parent=11 // pred_check_branch
          %305 = sbr.rel (%p303) target = $region40
        $region39: #{tpu_custom_call.1} parent=11 // pred_region
          _
        $region40: #{tpu_custom_call.1} parent=11 // pred_fallthru
          _
      $region12: #{tpu_custom_call.1} parent=5 // pred_fallthru
        _
      %p306 = scmp.lt.s32.totalorder %s23, 2
      // Predicated region
      $region41: #{tpu_custom_call.1} parent=5 // pred_check
        %p307 = pneg %p306
      $region42: #{tpu_custom_call.1} parent=5 // pred_check_branch
        %309 = sbr.rel (%p307) target = $region44
      $region43: #{tpu_custom_call.1} parent=5 // pred_region
        // Predicated region
        $region45: #{tpu_custom_call.1} parent=43 // pred_check
          %p310 = pneg %p43
        $region46: #{tpu_custom_call.1} parent=43 // pred_check_branch
          %312 = sbr.rel (%p310) target = $region48
        $region47: #{tpu_custom_call.1} parent=43 // pred_region
          %s313 = sand.u32 %s33, 1
          %s314 = scalar_lea.sflag [#allocation3], %s313
          %s315 = sand.u32 %s33, 1
          %s316 = smul.addr %s315, 8
          %s317 = scalar_lea.vmem [#allocation2], %s316
          %s319 = ssub.s32 128, 128
          %320 = vsyncadd %s314, %s319
          %s321 = smul.addr %s23, 128
          %s322 = scalar_lea.hbm %s0, %s321
          %s324 = sshll.u32 %s317, 4
          %s325 = int_to_ptr.vmem [resolvable:$true] %s324
          %327 = dma.hbm_to_vmem [thread:$0]  %s322, 128, %s325, %s314
        $region48: #{tpu_custom_call.1} parent=43 // pred_fallthru
          _
      $region44: #{tpu_custom_call.1} parent=5 // pred_fallthru
        _
      %p328 = scmp.le.s32.totalorder 1, %s23
      %p329 = scmp.lt.s32.totalorder %s23, 3
      %p330 = pnand %p328, %p329
      %p331 = pneg %p330
      // Predicated region
      $region49: #{tpu_custom_call.1} parent=5 // pred_check
        _
      $region50: #{tpu_custom_call.1} parent=5 // pred_check_branch
        %333 = sbr.rel (%p330) target = $region52
      $region51: #{tpu_custom_call.1} parent=5 // pred_region
        %s334 = ssub.s32 %s23, 1
        %s335 = sand.u32 %s36, 1
        %s336 = scalar_lea.sflag [#allocation3], %s335
        %s337 = sand.u32 %s36, 1
        %s338 = smul.addr %s337, 8
        %s339 = scalar_lea.vmem [#allocation2], %s338
        // Predicated region
        $region53: #{tpu_custom_call.1} parent=51 // pred_check
          %p340 = pneg %p49
        $region54: #{tpu_custom_call.1} parent=51 // pred_check_branch
          %342 = sbr.rel (%p340) target = $region56
        $region55: #{tpu_custom_call.1} parent=51 // pred_region
          %343 = dma.done %s336, 128
        $region56: #{tpu_custom_call.1} parent=51 // pred_fallthru
          _
        // Predicated region
        $region57: #{tpu_custom_call.1} parent=51 // pred_check
          %p344 = pneg %p70
        $region58: #{tpu_custom_call.1} parent=51 // pred_check_branch
          %346 = sbr.rel (%p344) target = $region60
        $region59: #{tpu_custom_call.1} parent=51 // pred_region
          %347 = dma.done [#allocation6], 6144
        $region60: #{tpu_custom_call.1} parent=51 // pred_fallthru
          _
        // Predicated region
        $region61: #{tpu_custom_call.1} parent=51 // pred_check
          %p348 = pneg %p91
        $region62: #{tpu_custom_call.1} parent=51 // pred_check_branch
          %350 = sbr.rel (%p348) target = $region64
        $region63: #{tpu_custom_call.1} parent=51 // pred_region
          %351 = dma.done [#allocation6], 48
        $region64: #{tpu_custom_call.1} parent=51 // pred_fallthru
          _
        // Predicated region
        $region65: #{tpu_custom_call.1} parent=51 // pred_check
          %p352 = pneg %p112
        $region66: #{tpu_custom_call.1} parent=51 // pred_check_branch
          %354 = sbr.rel (%p352) target = $region68
        $region67: #{tpu_custom_call.1} parent=51 // pred_region
          %355 = dma.done [#allocation9], 2048
        $region68: #{tpu_custom_call.1} parent=51 // pred_fallthru
          _
        // Predicated region
        $region69: #{tpu_custom_call.1} parent=51 // pred_check
          %p356 = pneg %p133
        $region70: #{tpu_custom_call.1} parent=51 // pred_check_branch
          %358 = sbr.rel (%p356) target = $region72
        $region71: #{tpu_custom_call.1} parent=51 // pred_region
          %359 = dma.done [#allocation9], 8192
        $region72: #{tpu_custom_call.1} parent=51 // pred_fallthru
          _
        // Predicated region
        $region73: #{tpu_custom_call.1} parent=51 // pred_check
          %p360 = pneg %p175
        $region74: #{tpu_custom_call.1} parent=51 // pred_check_branch
          %362 = sbr.rel (%p360) target = $region76
        $region75: #{tpu_custom_call.1} parent=51 // pred_region
          %363 = dma.done [#allocation12], 8192
        $region76: #{tpu_custom_call.1} parent=51 // pred_fallthru
          _
        %s364 = sand.u32 %s36, 1
        %s365 = scalar_lea.sflag [#allocation3], %s364
        %s366 = sand.u32 %s36, 1
        %s367 = smul.addr %s366, 8
        %s368 = scalar_lea.vmem [#allocation2], %s367
        %p369 = pneg %p49
        %p370 = pneg %p46
        %p371 = pneg %p70
        %p372 = pneg %p67
        %p373 = pneg %p91
        %p374 = pneg %p88
        %p375 = pneg %p112
        %p376 = pneg %p109
        %p377 = pneg %p133
        %p378 = pneg %p130
        %p379 = pneg %p154
        %p380 = pneg %p151
        %p381 = pneg %p175
        %p382 = pneg %p172
        %p383 = pneg %p196
        %p384 = pneg %p193
        %p385 = pneg %p222
        %p386 = pneg %p219
        %s387 = sand.u32 %s209, 1
        %s388 = scalar_lea.sflag [#allocation4], %s387
        %s389 = sand.u32 %s209, 1
        %s390 = smul.addr %s389, 8
        %s391 = scalar_lea.vmem [#allocation13], %s390
        %v392 = vld [vmem:[%s7] sm:$0x3f]
        %v393 = vld [vmem:[%s339] sm:$0xff]
        %v394 = vld [vmem:[#allocation5] sm:$0xff]
        %v395 = vld [vmem:[#allocation5 + $0x8] sm:$0xff]
        %v396 = vld [vmem:[#allocation5 + $0x10] sm:$0xff]
        %v397 = vld [vmem:[#allocation5 + $0x18] sm:$0xff]
        %v398 = vld [vmem:[#allocation5 + $0x20] sm:$0xff]
        %v399 = vld [vmem:[#allocation5 + $0x28] sm:$0xff]
        %v400 = vld [vmem:[#allocation5 + $0x30] sm:$0xff]
        %v401 = vld [vmem:[#allocation5 + $0x38] sm:$0xff]
        %v402 = vld [vmem:[#allocation5 + $0x40] sm:$0xff]
        %v403 = vld [vmem:[#allocation5 + $0x48] sm:$0xff]
        %v404 = vld [vmem:[#allocation5 + $0x50] sm:$0xff]
        %v405 = vld [vmem:[#allocation5 + $0x58] sm:$0xff]
        %v406 = vld [vmem:[#allocation5 + $0x60] sm:$0xff]
        %v407 = vld [vmem:[#allocation5 + $0x68] sm:$0xff]
        %v408 = vld [vmem:[#allocation5 + $0x70] sm:$0xff]
        %v409 = vld [vmem:[#allocation5 + $0x78] sm:$0xff]
        %v410 = vld [vmem:[#allocation5 + $0x80] sm:$0xff]
        %v411 = vld [vmem:[#allocation5 + $0x88] sm:$0xff]
        %v412 = vld [vmem:[#allocation5 + $0x90] sm:$0xff]
        %v413 = vld [vmem:[#allocation5 + $0x98] sm:$0xff]
        %v414 = vld [vmem:[#allocation5 + $0xa0] sm:$0xff]
        %v415 = vld [vmem:[#allocation5 + $0xa8] sm:$0xff]
        %v416 = vld [vmem:[#allocation5 + $0xb0] sm:$0xff]
        %v417 = vld [vmem:[#allocation5 + $0xb8] sm:$0xff]
        %v418 = vld [vmem:[#allocation5 + $0xc0] sm:$0xff]
        %v419 = vld [vmem:[#allocation5 + $0xc8] sm:$0xff]
        %v420 = vld [vmem:[#allocation5 + $0xd0] sm:$0xff]
        %v421 = vld [vmem:[#allocation5 + $0xd8] sm:$0xff]
        %v422 = vld [vmem:[#allocation5 + $0xe0] sm:$0xff]
        %v423 = vld [vmem:[#allocation5 + $0xe8] sm:$0xff]
        %v424 = vld [vmem:[#allocation5 + $0xf0] sm:$0xff]
        %v425 = vld [vmem:[#allocation5 + $0xf8] sm:$0xff]
        %v426 = vld [vmem:[#allocation5 + $0x100] sm:$0xff]
        %v427 = vld [vmem:[#allocation5 + $0x108] sm:$0xff]
        %v428 = vld [vmem:[#allocation5 + $0x110] sm:$0xff]
        %v429 = vld [vmem:[#allocation5 + $0x118] sm:$0xff]
        %v430 = vld [vmem:[#allocation5 + $0x120] sm:$0xff]
        %v431 = vld [vmem:[#allocation5 + $0x128] sm:$0xff]
        %v432 = vld [vmem:[#allocation5 + $0x130] sm:$0xff]
        %v433 = vld [vmem:[#allocation5 + $0x138] sm:$0xff]
        %v434 = vld [vmem:[#allocation5 + $0x140] sm:$0xff]
        %v435 = vld [vmem:[#allocation5 + $0x148] sm:$0xff]
        %v436 = vld [vmem:[#allocation5 + $0x150] sm:$0xff]
        %v437 = vld [vmem:[#allocation5 + $0x158] sm:$0xff]
        %v438 = vld [vmem:[#allocation5 + $0x160] sm:$0xff]
        %v439 = vld [vmem:[#allocation5 + $0x168] sm:$0xff]
        %v440 = vld [vmem:[#allocation5 + $0x170] sm:$0xff]
        %v441 = vld [vmem:[#allocation5 + $0x178] sm:$0xff]
        %v442 = vld [vmem:[#allocation7] sm:$0x7]
        %v444 = vlaneseq
        %v445 = vshrl.u32 %v444, 7
        %v446 = vsub.s32 0, %v445
        %v447 = vrot.slane %v442, %v446
        %v448 = vlaneseq
        %v449 = vshrl.u32 %v448, 7
        %v450 = vsub.s32 1, %v449
        %v451 = vrot.slane %v442, %v450
        %v452 = vlaneseq
        %v453 = vshrl.u32 %v452, 7
        %v454 = vsub.s32 2, %v453
        %v455 = vrot.slane %v442, %v454
        %459 = vmatprep.subr.mxu0 %v440
        %460 = vmatpush1.msra.mxu0 %v439
        %461 = vmatprep.subr.mxu0 %v437
        %462 = vmatpush1.msra.mxu0 %v436
        %463 = vmatprep.subr.mxu0 %v434
        %464 = vmatpush1.msra.mxu0 %v433
        %465 = vmatprep.subr.mxu0 %v431
        %466 = vmatpush1.msra.mxu0 %v430
        %467 = vmatprep.subr.mxu0 %v428
        %468 = vmatpush1.msra.mxu0 %v427
        %469 = vmatprep.subr.mxu0 %v425
        %470 = vmatpush1.msra.mxu0 %v424
        %471 = vmatprep.subr.mxu0 %v422
        %472 = vmatpush1.msra.mxu0 %v421
        %473 = vmatprep.subr.mxu0 %v419
        %474 = vmatpush1.msra.mxu0 %v418
        %475 = vmatprep.subr.mxu0 %v416
        %476 = vmatpush1.msra.mxu0 %v415
        %477 = vmatprep.subr.mxu0 %v413
        %478 = vmatpush1.msra.mxu0 %v412
        %479 = vmatprep.subr.mxu0 %v410
        %480 = vmatpush1.msra.mxu0 %v409
        %481 = vmatprep.subr.mxu0 %v407
        %482 = vmatpush1.msra.mxu0 %v406
        %483 = vmatprep.subr.mxu0 %v404
        %484 = vmatpush1.msra.mxu0 %v403
        %485 = vmatprep.subr.mxu0 %v401
        %486 = vmatpush1.msra.mxu0 %v400
        %487 = vmatprep.subr.mxu0 %v398
        %488 = vmatpush1.msra.mxu0 %v397
        %489 = vmatprep.subr.mxu0 %v395
        %490 = vmatpush1.msra.mxu0 %v394
        %491 = vmatprep.subr.mxu0 0.0
        %492 = vmatpush2.msra.mxu0 0.0
        %493 = vmatprep.subr.mxu0 0.0
        %494 = vmatpush2.msra.mxu0 0.0
        %495 = vmatprep.subr.mxu0 0.0
        %496 = vmatpush2.msra.mxu0 0.0
        %497 = vmatprep.subr.mxu0 0.0
        %498 = vmatpush2.msra.mxu0 0.0
        %499 = vmatprep.subr.mxu0 0.0
        %500 = vmatpush2.msra.mxu0 0.0
        %501 = vmatprep.subr.mxu0 0.0
        %502 = vmatpush2.msra.mxu0 0.0
        %503 = vmatprep.subr.mxu0 0.0
        %504 = vmatpush2.msra.mxu0 0.0
        %505 = vmatprep.subr.mxu0 0.0
        %506 = vmatpush2.msra.mxu0 0.0
        %507 = vmatprep.subr.mxu0 0.0
        %508 = vmatpush2.msra.mxu0 0.0
        %509 = vmatprep.subr.mxu0 0.0
        %510 = vmatpush2.msra.mxu0 0.0
        %511 = vmatprep.subr.mxu0 0.0
        %512 = vmatpush2.msra.mxu0 0.0
        %513 = vmatprep.subr.mxu0 0.0
        %514 = vmatpush2.msra.mxu0 0.0
        %515 = vmatprep.subr.mxu0 0.0
        %516 = vmatpush2.msra.mxu0 0.0
        %517 = vmatprep.subr.mxu0 0.0
        %518 = vmatpush2.msra.mxu0 0.0
        %519 = vmatprep.subr.mxu0 0.0
        %520 = vmatpush2.msra.mxu0 0.0
        %521 = vmatprep.subr.mxu0 0.0
        %522 = vmatpush2.msra.mxu0 0.0
        %523 = vmatprep.mubr.f32.mxu0 0.0
        %524 = vmatmul.mubr.f32.gmra.mxu0 %v393
        %v525 = vpop.f32.mrf.mxu0
        %v526 = vadd.f32 %v447, %v525
        %v527 = vpop.f32.mrf.mxu0
        %v528 = vadd.f32 %v451, %v527
        %529 = vdwg.mxu0
        %530 = vmatprep.subr.mxu0 0.0
        %531 = vmatpush1.msra.mxu0 %v441
        %532 = vmatprep.subr.mxu0 0.0
        %533 = vmatpush1.msra.mxu0 %v438
        %534 = vmatprep.subr.mxu0 0.0
        %535 = vmatpush1.msra.mxu0 %v435
        %536 = vmatprep.subr.mxu0 0.0
        %537 = vmatpush1.msra.mxu0 %v432
        %538 = vmatprep.subr.mxu0 0.0
        %539 = vmatpush1.msra.mxu0 %v429
        %540 = vmatprep.subr.mxu0 0.0
        %541 = vmatpush1.msra.mxu0 %v426
        %542 = vmatprep.subr.mxu0 0.0
        %543 = vmatpush1.msra.mxu0 %v423
        %544 = vmatprep.subr.mxu0 0.0
        %545 = vmatpush1.msra.mxu0 %v420
        %546 = vmatprep.subr.mxu0 0.0
        %547 = vmatpush1.msra.mxu0 %v417
        %548 = vmatprep.subr.mxu0 0.0
        %549 = vmatpush1.msra.mxu0 %v414
        %550 = vmatprep.subr.mxu0 0.0
        %551 = vmatpush1.msra.mxu0 %v411
        %552 = vmatprep.subr.mxu0 0.0
        %553 = vmatpush1.msra.mxu0 %v408
        %554 = vmatprep.subr.mxu0 0.0
        %555 = vmatpush1.msra.mxu0 %v405
        %556 = vmatprep.subr.mxu0 0.0
        %557 = vmatpush1.msra.mxu0 %v402
        %558 = vmatprep.subr.mxu0 0.0
        %559 = vmatpush1.msra.mxu0 %v399
        %560 = vmatprep.subr.mxu0 0.0
        %561 = vmatpush1.msra.mxu0 %v396
        %562 = vmatprep.subr.mxu0 0.0
        %563 = vmatpush2.msra.mxu0 0.0
        %564 = vmatprep.subr.mxu0 0.0
        %565 = vmatpush2.msra.mxu0 0.0
        %566 = vmatprep.subr.mxu0 0.0
        %567 = vmatpush2.msra.mxu0 0.0
        %568 = vmatprep.subr.mxu0 0.0
        %569 = vmatpush2.msra.mxu0 0.0
        %570 = vmatprep.subr.mxu0 0.0
        %571 = vmatpush2.msra.mxu0 0.0
        %572 = vmatprep.subr.mxu0 0.0
        %573 = vmatpush2.msra.mxu0 0.0
        %574 = vmatprep.subr.mxu0 0.0
        %575 = vmatpush2.msra.mxu0 0.0
        %576 = vmatprep.subr.mxu0 0.0
        %577 = vmatpush2.msra.mxu0 0.0
        %578 = vmatprep.subr.mxu0 0.0
        %579 = vmatpush2.msra.mxu0 0.0
        %580 = vmatprep.subr.mxu0 0.0
        %581 = vmatpush2.msra.mxu0 0.0
        %582 = vmatprep.subr.mxu0 0.0
        %583 = vmatpush2.msra.mxu0 0.0
        %584 = vmatprep.subr.mxu0 0.0
        %585 = vmatpush2.msra.mxu0 0.0
        %586 = vmatprep.subr.mxu0 0.0
        %587 = vmatpush2.msra.mxu0 0.0
        %588 = vmatprep.subr.mxu0 0.0
        %589 = vmatpush2.msra.mxu0 0.0
        %590 = vmatprep.subr.mxu0 0.0
        %591 = vmatpush2.msra.mxu0 0.0
        %592 = vmatprep.subr.mxu0 0.0
        %593 = vmatpush2.msra.mxu0 0.0
        %594 = vmatprep.mubr.f32.mxu0 0.0
        %595 = vmatmul.mubr.f32.gmra.mxu0 %v393
        %v596 = vpop.f32.mrf.mxu0
        %v597 = vadd.f32 %v455, %v596
        %v598 = vpop.f32.mrf.mxu0
        %599 = vdwg.mxu0
        %601 = vrot.lane.b32.xlu0 %v526, 96
        %v602 = vpop.permute.xlu0 %601
        %603 = vrot.lane.b32.xlu0 %v526, 64
        %v604 = vpop.permute.xlu0 %603
        %605 = vrot.lane.b32.xlu0 %v526, 32
        %v606 = vpop.permute.xlu0 %605
        %608 = vrot.lane.b32.xlu0 %v528, 96
        %v609 = vpop.permute.xlu0 %608
        %610 = vrot.lane.b32.xlu0 %v528, 64
        %v611 = vpop.permute.xlu0 %610
        %612 = vrot.lane.b32.xlu0 %v528, 32
        %v613 = vpop.permute.xlu0 %612
        %615 = vrot.lane.b32.xlu0 %v597, 96
        %v616 = vpop.permute.xlu0 %615
        %618 = vrot.lane.b32.xlu0 %v597, 64
        %v619 = vpop.permute.xlu0 %618
        %621 = vrot.lane.b32.xlu0 %v597, 32
        %v622 = vpop.permute.xlu0 %621
        %vm624 = vcmask 261120
        %v625 = vsel %vm624, %v526, 0
        %v627 = vsel %vm624, %v528, 0
        %629 = vmatprep.subr.mxu0 0.0
        %630 = vmatpush1.xpose.msra.mxu0 0.0
        %631 = vmatprep.subr.mxu0 0.0
        %632 = vmatpush1.xpose.msra.mxu0 0.0
        %633 = vmatprep.subr.mxu0 0.0
        %634 = vmatpush1.xpose.msra.mxu0 0.0
        %635 = vmatprep.subr.mxu0 0.0
        %636 = vmatpush1.xpose.msra.mxu0 0.0
        %637 = vmatprep.subr.mxu0 0.0
        %638 = vmatpush1.xpose.msra.mxu0 0.0
        %639 = vmatprep.subr.mxu0 0.0
        %640 = vmatpush1.xpose.msra.mxu0 0.0
        %641 = vmatprep.subr.mxu0 0.0
        %642 = vmatpush1.xpose.msra.mxu0 0.0
        %643 = vmatprep.subr.mxu0 0.0
        %644 = vmatpush1.xpose.msra.mxu0 0.0
        %645 = vmatprep.subr.mxu0 0.0
        %646 = vmatpush1.xpose.msra.mxu0 0.0
        %647 = vmatprep.subr.mxu0 0.0
        %648 = vmatpush1.xpose.msra.mxu0 0.0
        %649 = vmatprep.subr.mxu0 0.0
        %650 = vmatpush1.xpose.msra.mxu0 0.0
        %651 = vmatprep.subr.mxu0 0.0
        %652 = vmatpush1.xpose.msra.mxu0 0.0
        %653 = vmatprep.subr.mxu0 0.0
        %654 = vmatpush1.xpose.msra.mxu0 0.0
        %655 = vmatprep.subr.mxu0 0.0
        %656 = vmatpush1.xpose.msra.mxu0 0.0
        %657 = vmatprep.subr.mxu0 0.0
        %658 = vmatpush1.xpose.msra.mxu0 0.0
        %659 = vmatprep.subr.mxu0 0.0
        %660 = vmatpush1.xpose.msra.mxu0 %v627
        %661 = vmatprep.subr.mxu0 0.0
        %662 = vmatpush2.xpose.msra.mxu0 0.0
        %663 = vmatprep.subr.mxu0 0.0
        %664 = vmatpush2.xpose.msra.mxu0 0.0
        %665 = vmatprep.subr.mxu0 0.0
        %666 = vmatpush2.xpose.msra.mxu0 0.0
        %667 = vmatprep.subr.mxu0 0.0
        %668 = vmatpush2.xpose.msra.mxu0 0.0
        %669 = vmatprep.subr.mxu0 0.0
        %670 = vmatpush2.xpose.msra.mxu0 0.0
        %671 = vmatprep.subr.mxu0 0.0
        %672 = vmatpush2.xpose.msra.mxu0 0.0
        %673 = vmatprep.subr.mxu0 0.0
        %674 = vmatpush2.xpose.msra.mxu0 0.0
        %675 = vmatprep.subr.mxu0 0.0
        %676 = vmatpush2.xpose.msra.mxu0 0.0
        %677 = vmatprep.subr.mxu0 0.0
        %678 = vmatpush2.xpose.msra.mxu0 0.0
        %679 = vmatprep.subr.mxu0 0.0
        %680 = vmatpush2.xpose.msra.mxu0 0.0
        %681 = vmatprep.subr.mxu0 0.0
        %682 = vmatpush2.xpose.msra.mxu0 0.0
        %683 = vmatprep.subr.mxu0 0.0
        %684 = vmatpush2.xpose.msra.mxu0 0.0
        %685 = vmatprep.subr.mxu0 0.0
        %686 = vmatpush2.xpose.msra.mxu0 0.0
        %687 = vmatprep.subr.mxu0 0.0
        %688 = vmatpush2.xpose.msra.mxu0 0.0
        %689 = vmatprep.subr.mxu0 0.0
        %690 = vmatpush2.xpose.msra.mxu0 0.0
        %691 = vmatprep.subr.mxu0 0.0
        %692 = vmatpush2.xpose.msra.mxu0 0.0
        %693 = vmatprep.mubr.f32.mxu0 0.0
        %694 = vmatmul.mubr.f32.gmra.mxu0 %v625
        %v695 = vpop.f32.mrf.mxu0
        %v696 = vadd.f32 0.0, %v695
        %v697 = vpop.f32.mrf.mxu0
        %698 = vdwg.mxu0
        %v699 = vsel %vm624, %v602, 0
        %v701 = vsel %vm624, %v609, 0
        %703 = vmatprep.subr.mxu0 0.0
        %704 = vmatpush1.xpose.msra.mxu0 0.0
        %705 = vmatprep.subr.mxu0 0.0
        %706 = vmatpush1.xpose.msra.mxu0 0.0
        %707 = vmatprep.subr.mxu0 0.0
        %708 = vmatpush1.xpose.msra.mxu0 0.0
        %709 = vmatprep.subr.mxu0 0.0
        %710 = vmatpush1.xpose.msra.mxu0 0.0
        %711 = vmatprep.subr.mxu0 0.0
        %712 = vmatpush1.xpose.msra.mxu0 0.0
        %713 = vmatprep.subr.mxu0 0.0
        %714 = vmatpush1.xpose.msra.mxu0 0.0
        %715 = vmatprep.subr.mxu0 0.0
        %716 = vmatpush1.xpose.msra.mxu0 0.0
        %717 = vmatprep.subr.mxu0 0.0
        %718 = vmatpush1.xpose.msra.mxu0 0.0
        %719 = vmatprep.subr.mxu0 0.0
        %720 = vmatpush1.xpose.msra.mxu0 0.0
        %721 = vmatprep.subr.mxu0 0.0
        %722 = vmatpush1.xpose.msra.mxu0 0.0
        %723 = vmatprep.subr.mxu0 0.0
        %724 = vmatpush1.xpose.msra.mxu0 0.0
        %725 = vmatprep.subr.mxu0 0.0
        %726 = vmatpush1.xpose.msra.mxu0 0.0
        %727 = vmatprep.subr.mxu0 0.0
        %728 = vmatpush1.xpose.msra.mxu0 0.0
        %729 = vmatprep.subr.mxu0 0.0
        %730 = vmatpush1.xpose.msra.mxu0 0.0
        %731 = vmatprep.subr.mxu0 0.0
        %732 = vmatpush1.xpose.msra.mxu0 0.0
        %733 = vmatprep.subr.mxu0 0.0
        %734 = vmatpush1.xpose.msra.mxu0 %v701
        %735 = vmatprep.subr.mxu0 0.0
        %736 = vmatpush2.xpose.msra.mxu0 0.0
        %737 = vmatprep.subr.mxu0 0.0
        %738 = vmatpush2.xpose.msra.mxu0 0.0
        %739 = vmatprep.subr.mxu0 0.0
        %740 = vmatpush2.xpose.msra.mxu0 0.0
        %741 = vmatprep.subr.mxu0 0.0
        %742 = vmatpush2.xpose.msra.mxu0 0.0
        %743 = vmatprep.subr.mxu0 0.0
        %744 = vmatpush2.xpose.msra.mxu0 0.0
        %745 = vmatprep.subr.mxu0 0.0
        %746 = vmatpush2.xpose.msra.mxu0 0.0
        %747 = vmatprep.subr.mxu0 0.0
        %748 = vmatpush2.xpose.msra.mxu0 0.0
        %749 = vmatprep.subr.mxu0 0.0
        %750 = vmatpush2.xpose.msra.mxu0 0.0
        %751 = vmatprep.subr.mxu0 0.0
        %752 = vmatpush2.xpose.msra.mxu0 0.0
        %753 = vmatprep.subr.mxu0 0.0
        %754 = vmatpush2.xpose.msra.mxu0 0.0
        %755 = vmatprep.subr.mxu0 0.0
        %756 = vmatpush2.xpose.msra.mxu0 0.0
        %757 = vmatprep.subr.mxu0 0.0
        %758 = vmatpush2.xpose.msra.mxu0 0.0
        %759 = vmatprep.subr.mxu0 0.0
        %760 = vmatpush2.xpose.msra.mxu0 0.0
        %761 = vmatprep.subr.mxu0 0.0
        %762 = vmatpush2.xpose.msra.mxu0 0.0
        %763 = vmatprep.subr.mxu0 0.0
        %764 = vmatpush2.xpose.msra.mxu0 0.0
        %765 = vmatprep.subr.mxu0 0.0
        %766 = vmatpush2.xpose.msra.mxu0 0.0
        %767 = vmatprep.mubr.f32.mxu0 0.0
        %768 = vmatmul.mubr.f32.gmra.mxu0 %v699
        %v769 = vpop.f32.mrf.mxu0
        %v770 = vadd.f32 0.0, %v769
        %v771 = vpop.f32.mrf.mxu0
        %772 = vdwg.mxu0
        %v773 = vsel %vm624, %v604, 0
        %v775 = vsel %vm624, %v611, 0
        %777 = vmatprep.subr.mxu0 0.0
        %778 = vmatpush1.xpose.msra.mxu0 0.0
        %779 = vmatprep.subr.mxu0 0.0
        %780 = vmatpush1.xpose.msra.mxu0 0.0
        %781 = vmatprep.subr.mxu0 0.0
        %782 = vmatpush1.xpose.msra.mxu0 0.0
        %783 = vmatprep.subr.mxu0 0.0
        %784 = vmatpush1.xpose.msra.mxu0 0.0
        %785 = vmatprep.subr.mxu0 0.0
        %786 = vmatpush1.xpose.msra.mxu0 0.0
        %787 = vmatprep.subr.mxu0 0.0
        %788 = vmatpush1.xpose.msra.mxu0 0.0
        %789 = vmatprep.subr.mxu0 0.0
        %790 = vmatpush1.xpose.msra.mxu0 0.0
        %791 = vmatprep.subr.mxu0 0.0
        %792 = vmatpush1.xpose.msra.mxu0 0.0
        %793 = vmatprep.subr.mxu0 0.0
        %794 = vmatpush1.xpose.msra.mxu0 0.0
        %795 = vmatprep.subr.mxu0 0.0
        %796 = vmatpush1.xpose.msra.mxu0 0.0
        %797 = vmatprep.subr.mxu0 0.0
        %798 = vmatpush1.xpose.msra.mxu0 0.0
        %799 = vmatprep.subr.mxu0 0.0
        %800 = vmatpush1.xpose.msra.mxu0 0.0
        %801 = vmatprep.subr.mxu0 0.0
        %802 = vmatpush1.xpose.msra.mxu0 0.0
        %803 = vmatprep.subr.mxu0 0.0
        %804 = vmatpush1.xpose.msra.mxu0 0.0
        %805 = vmatprep.subr.mxu0 0.0
        %806 = vmatpush1.xpose.msra.mxu0 0.0
        %807 = vmatprep.subr.mxu0 0.0
        %808 = vmatpush1.xpose.msra.mxu0 %v775
        %809 = vmatprep.subr.mxu0 0.0
        %810 = vmatpush2.xpose.msra.mxu0 0.0
        %811 = vmatprep.subr.mxu0 0.0
        %812 = vmatpush2.xpose.msra.mxu0 0.0
        %813 = vmatprep.subr.mxu0 0.0
        %814 = vmatpush2.xpose.msra.mxu0 0.0
        %815 = vmatprep.subr.mxu0 0.0
        %816 = vmatpush2.xpose.msra.mxu0 0.0
        %817 = vmatprep.subr.mxu0 0.0
        %818 = vmatpush2.xpose.msra.mxu0 0.0
        %819 = vmatprep.subr.mxu0 0.0
        %820 = vmatpush2.xpose.msra.mxu0 0.0
        %821 = vmatprep.subr.mxu0 0.0
        %822 = vmatpush2.xpose.msra.mxu0 0.0
        %823 = vmatprep.subr.mxu0 0.0
        %824 = vmatpush2.xpose.msra.mxu0 0.0
        %825 = vmatprep.subr.mxu0 0.0
        %826 = vmatpush2.xpose.msra.mxu0 0.0
        %827 = vmatprep.subr.mxu0 0.0
        %828 = vmatpush2.xpose.msra.mxu0 0.0
        %829 = vmatprep.subr.mxu0 0.0
        %830 = vmatpush2.xpose.msra.mxu0 0.0
        %831 = vmatprep.subr.mxu0 0.0
        %832 = vmatpush2.xpose.msra.mxu0 0.0
        %833 = vmatprep.subr.mxu0 0.0
        %834 = vmatpush2.xpose.msra.mxu0 0.0
        %835 = vmatprep.subr.mxu0 0.0
        %836 = vmatpush2.xpose.msra.mxu0 0.0
        %837 = vmatprep.subr.mxu0 0.0
        %838 = vmatpush2.xpose.msra.mxu0 0.0
        %839 = vmatprep.subr.mxu0 0.0
        %840 = vmatpush2.xpose.msra.mxu0 0.0
        %841 = vmatprep.mubr.f32.mxu0 0.0
        %842 = vmatmul.mubr.f32.gmra.mxu0 %v773
        %v843 = vpop.f32.mrf.mxu0
        %v844 = vadd.f32 0.0, %v843
        %v845 = vpop.f32.mrf.mxu0
        %846 = vdwg.mxu0
        %v847 = vsel %vm624, %v606, 0
        %v849 = vsel %vm624, %v613, 0
        %851 = vmatprep.subr.mxu0 0.0
        %852 = vmatpush1.xpose.msra.mxu0 0.0
        %853 = vmatprep.subr.mxu0 0.0
        %854 = vmatpush1.xpose.msra.mxu0 0.0
        %855 = vmatprep.subr.mxu0 0.0
        %856 = vmatpush1.xpose.msra.mxu0 0.0
        %857 = vmatprep.subr.mxu0 0.0
        %858 = vmatpush1.xpose.msra.mxu0 0.0
        %859 = vmatprep.subr.mxu0 0.0
        %860 = vmatpush1.xpose.msra.mxu0 0.0
        %861 = vmatprep.subr.mxu0 0.0
        %862 = vmatpush1.xpose.msra.mxu0 0.0
        %863 = vmatprep.subr.mxu0 0.0
        %864 = vmatpush1.xpose.msra.mxu0 0.0
        %865 = vmatprep.subr.mxu0 0.0
        %866 = vmatpush1.xpose.msra.mxu0 0.0
        %867 = vmatprep.subr.mxu0 0.0
        %868 = vmatpush1.xpose.msra.mxu0 0.0
        %869 = vmatprep.subr.mxu0 0.0
        %870 = vmatpush1.xpose.msra.mxu0 0.0
        %871 = vmatprep.subr.mxu0 0.0
        %872 = vmatpush1.xpose.msra.mxu0 0.0
        %873 = vmatprep.subr.mxu0 0.0
        %874 = vmatpush1.xpose.msra.mxu0 0.0
        %875 = vmatprep.subr.mxu0 0.0
        %876 = vmatpush1.xpose.msra.mxu0 0.0
        %877 = vmatprep.subr.mxu0 0.0
        %878 = vmatpush1.xpose.msra.mxu0 0.0
        %879 = vmatprep.subr.mxu0 0.0
        %880 = vmatpush1.xpose.msra.mxu0 0.0
        %881 = vmatprep.subr.mxu0 0.0
        %882 = vmatpush1.xpose.msra.mxu0 %v849
        %883 = vmatprep.subr.mxu0 0.0
        %884 = vmatpush2.xpose.msra.mxu0 0.0
        %885 = vmatprep.subr.mxu0 0.0
        %886 = vmatpush2.xpose.msra.mxu0 0.0
        %887 = vmatprep.subr.mxu0 0.0
        %888 = vmatpush2.xpose.msra.mxu0 0.0
        %889 = vmatprep.subr.mxu0 0.0
        %890 = vmatpush2.xpose.msra.mxu0 0.0
        %891 = vmatprep.subr.mxu0 0.0
        %892 = vmatpush2.xpose.msra.mxu0 0.0
        %893 = vmatprep.subr.mxu0 0.0
        %894 = vmatpush2.xpose.msra.mxu0 0.0
        %895 = vmatprep.subr.mxu0 0.0
        %896 = vmatpush2.xpose.msra.mxu0 0.0
        %897 = vmatprep.subr.mxu0 0.0
        %898 = vmatpush2.xpose.msra.mxu0 0.0
        %899 = vmatprep.subr.mxu0 0.0
        %900 = vmatpush2.xpose.msra.mxu0 0.0
        %901 = vmatprep.subr.mxu0 0.0
        %902 = vmatpush2.xpose.msra.mxu0 0.0
        %903 = vmatprep.subr.mxu0 0.0
        %904 = vmatpush2.xpose.msra.mxu0 0.0
        %905 = vmatprep.subr.mxu0 0.0
        %906 = vmatpush2.xpose.msra.mxu0 0.0
        %907 = vmatprep.subr.mxu0 0.0
        %908 = vmatpush2.xpose.msra.mxu0 0.0
        %909 = vmatprep.subr.mxu0 0.0
        %910 = vmatpush2.xpose.msra.mxu0 0.0
        %911 = vmatprep.subr.mxu0 0.0
        %912 = vmatpush2.xpose.msra.mxu0 0.0
        %913 = vmatprep.subr.mxu0 0.0
        %914 = vmatpush2.xpose.msra.mxu0 0.0
        %915 = vmatprep.mubr.f32.mxu0 0.0
        %916 = vmatmul.mubr.f32.gmra.mxu0 %v847
        %v917 = vpop.f32.mrf.mxu0
        %v918 = vadd.f32 0.0, %v917
        %v919 = vpop.f32.mrf.mxu0
        %920 = vdwg.mxu0
        %vm921 = vcmask 64512
        %v922 = vsel %vm921, %v696, -inf
        %923 = vmax.xlane.f32.xlu0 %v922
        %v924 = vpop.xlane.xlu0 %923
        %v925 = vsel %vm921, %v770, -inf
        %926 = vmax.xlane.f32.xlu0 %v925
        %v927 = vpop.xlane.xlu0 %926
        %v928 = vsel %vm921, %v844, -inf
        %929 = vmax.xlane.f32.xlu0 %v928
        %v930 = vpop.xlane.xlu0 %929
        %v931 = vsel %vm921, %v918, -inf
        %932 = vmax.xlane.f32.xlu0 %v931
        %v933 = vpop.xlane.xlu0 %932
        %v934 = vsub.f32 %v696, %v924
        %v935 = vsub.f32 %v770, %v927
        %v936 = vsub.f32 %v844, %v930
        %v937 = vsub.f32 %v918, %v933
        %v938 = vmul.f32 %v934, 1.442695
        %v939 = vpow.pop %v938
        %v940 = vmul.f32 %v935, 1.442695
        %v941 = vpow.pop %v940
        %v942 = vmul.f32 %v936, 1.442695
        %v943 = vpow.pop %v942
        %v944 = vmul.f32 %v937, 1.442695
        %v945 = vpow.pop %v944
        %v946 = vsel %vm921, %v939, 0.0
        %947 = vadd.xlane.f32.xlu0 %v946
        %v948 = vpop.xlane.xlu0 %947
        %v949 = vsel %vm921, %v941, 0.0
        %950 = vadd.xlane.f32.xlu0 %v949
        %v951 = vpop.xlane.xlu0 %950
        %v952 = vsel %vm921, %v943, 0.0
        %953 = vadd.xlane.f32.xlu0 %v952
        %v954 = vpop.xlane.xlu0 %953
        %v955 = vsel %vm921, %v945, 0.0
        %956 = vadd.xlane.f32.xlu0 %v955
        %v957 = vpop.xlane.xlu0 %956
        %v958 = vrcp.pop %v948
        %v959 = vrcp.pop %v951
        %v960 = vrcp.pop %v954
        %v961 = vrcp.pop %v957
        %v962 = vmul.f32 %v939, %v958
        %v963 = vmul.f32 %v941, %v959
        %v964 = vmul.f32 %v943, %v960
        %v965 = vmul.f32 %v945, %v961
        %v967 = vsel %vm921, %v962, 0
        %969 = vmatprep.subr.mxu0 0.0
        %970 = vmatpush1.msra.mxu0 0.0
        %971 = vmatprep.subr.mxu0 0.0
        %972 = vmatpush1.msra.mxu0 0.0
        %973 = vmatprep.subr.mxu0 0.0
        %974 = vmatpush1.msra.mxu0 0.0
        %975 = vmatprep.subr.mxu0 0.0
        %976 = vmatpush1.msra.mxu0 0.0
        %977 = vmatprep.subr.mxu0 0.0
        %978 = vmatpush1.msra.mxu0 0.0
        %979 = vmatprep.subr.mxu0 0.0
        %980 = vmatpush1.msra.mxu0 0.0
        %981 = vmatprep.subr.mxu0 0.0
        %982 = vmatpush1.msra.mxu0 0.0
        %983 = vmatprep.subr.mxu0 0.0
        %984 = vmatpush1.msra.mxu0 0.0
        %985 = vmatprep.subr.mxu0 0.0
        %986 = vmatpush1.msra.mxu0 0.0
        %987 = vmatprep.subr.mxu0 0.0
        %988 = vmatpush1.msra.mxu0 0.0
        %989 = vmatprep.subr.mxu0 0.0
        %990 = vmatpush1.msra.mxu0 0.0
        %991 = vmatprep.subr.mxu0 0.0
        %992 = vmatpush1.msra.mxu0 0.0
        %993 = vmatprep.subr.mxu0 0.0
        %994 = vmatpush1.msra.mxu0 0.0
        %995 = vmatprep.subr.mxu0 0.0
        %996 = vmatpush1.msra.mxu0 0.0
        %997 = vmatprep.subr.mxu0 0.0
        %998 = vmatpush1.msra.mxu0 0.0
        %999 = vmatprep.subr.mxu0 0.0
        %1000 = vmatpush1.msra.mxu0 %v597
        %1001 = vmatprep.subr.mxu0 0.0
        %1002 = vmatpush2.msra.mxu0 0.0
        %1003 = vmatprep.subr.mxu0 0.0
        %1004 = vmatpush2.msra.mxu0 0.0
        %1005 = vmatprep.subr.mxu0 0.0
        %1006 = vmatpush2.msra.mxu0 0.0
        %1007 = vmatprep.subr.mxu0 0.0
        %1008 = vmatpush2.msra.mxu0 0.0
        %1009 = vmatprep.subr.mxu0 0.0
        %1010 = vmatpush2.msra.mxu0 0.0
        %1011 = vmatprep.subr.mxu0 0.0
        %1012 = vmatpush2.msra.mxu0 0.0
        %1013 = vmatprep.subr.mxu0 0.0
        %1014 = vmatpush2.msra.mxu0 0.0
        %1015 = vmatprep.subr.mxu0 0.0
        %1016 = vmatpush2.msra.mxu0 0.0
        %1017 = vmatprep.subr.mxu0 0.0
        %1018 = vmatpush2.msra.mxu0 0.0
        %1019 = vmatprep.subr.mxu0 0.0
        %1020 = vmatpush2.msra.mxu0 0.0
        %1021 = vmatprep.subr.mxu0 0.0
        %1022 = vmatpush2.msra.mxu0 0.0
        %1023 = vmatprep.subr.mxu0 0.0
        %1024 = vmatpush2.msra.mxu0 0.0
        %1025 = vmatprep.subr.mxu0 0.0
        %1026 = vmatpush2.msra.mxu0 0.0
        %1027 = vmatprep.subr.mxu0 0.0
        %1028 = vmatpush2.msra.mxu0 0.0
        %1029 = vmatprep.subr.mxu0 0.0
        %1030 = vmatpush2.msra.mxu0 0.0
        %1031 = vmatprep.subr.mxu0 0.0
        %1032 = vmatpush2.msra.mxu0 0.0
        %1033 = vmatprep.mubr.f32.mxu0 0.0
        %1034 = vmatmul.mubr.f32.gmra.mxu0 %v967
        %v1035 = vpop.f32.mrf.mxu0
        %v1036 = vadd.f32 0.0, %v1035
        %v1037 = vpop.f32.mrf.mxu0
        %1038 = vdwg.mxu0
        %v1040 = vsel %vm921, %v963, 0
        %1042 = vmatprep.subr.mxu0 0.0
        %1043 = vmatpush1.msra.mxu0 0.0
        %1044 = vmatprep.subr.mxu0 0.0
        %1045 = vmatpush1.msra.mxu0 0.0
        %1046 = vmatprep.subr.mxu0 0.0
        %1047 = vmatpush1.msra.mxu0 0.0
        %1048 = vmatprep.subr.mxu0 0.0
        %1049 = vmatpush1.msra.mxu0 0.0
        %1050 = vmatprep.subr.mxu0 0.0
        %1051 = vmatpush1.msra.mxu0 0.0
        %1052 = vmatprep.subr.mxu0 0.0
        %1053 = vmatpush1.msra.mxu0 0.0
        %1054 = vmatprep.subr.mxu0 0.0
        %1055 = vmatpush1.msra.mxu0 0.0
        %1056 = vmatprep.subr.mxu0 0.0
        %1057 = vmatpush1.msra.mxu0 0.0
        %1058 = vmatprep.subr.mxu0 0.0
        %1059 = vmatpush1.msra.mxu0 0.0
        %1060 = vmatprep.subr.mxu0 0.0
        %1061 = vmatpush1.msra.mxu0 0.0
        %1062 = vmatprep.subr.mxu0 0.0
        %1063 = vmatpush1.msra.mxu0 0.0
        %1064 = vmatprep.subr.mxu0 0.0
        %1065 = vmatpush1.msra.mxu0 0.0
        %1066 = vmatprep.subr.mxu0 0.0
        %1067 = vmatpush1.msra.mxu0 0.0
        %1068 = vmatprep.subr.mxu0 0.0
        %1069 = vmatpush1.msra.mxu0 0.0
        %1070 = vmatprep.subr.mxu0 0.0
        %1071 = vmatpush1.msra.mxu0 0.0
        %1072 = vmatprep.subr.mxu0 0.0
        %1073 = vmatpush1.msra.mxu0 %v616
        %1074 = vmatprep.subr.mxu0 0.0
        %1075 = vmatpush2.msra.mxu0 0.0
        %1076 = vmatprep.subr.mxu0 0.0
        %1077 = vmatpush2.msra.mxu0 0.0
        %1078 = vmatprep.subr.mxu0 0.0
        %1079 = vmatpush2.msra.mxu0 0.0
        %1080 = vmatprep.subr.mxu0 0.0
        %1081 = vmatpush2.msra.mxu0 0.0
        %1082 = vmatprep.subr.mxu0 0.0
        %1083 = vmatpush2.msra.mxu0 0.0
        %1084 = vmatprep.subr.mxu0 0.0
        %1085 = vmatpush2.msra.mxu0 0.0
        %1086 = vmatprep.subr.mxu0 0.0
        %1087 = vmatpush2.msra.mxu0 0.0
        %1088 = vmatprep.subr.mxu0 0.0
        %1089 = vmatpush2.msra.mxu0 0.0
        %1090 = vmatprep.subr.mxu0 0.0
        %1091 = vmatpush2.msra.mxu0 0.0
        %1092 = vmatprep.subr.mxu0 0.0
        %1093 = vmatpush2.msra.mxu0 0.0
        %1094 = vmatprep.subr.mxu0 0.0
        %1095 = vmatpush2.msra.mxu0 0.0
        %1096 = vmatprep.subr.mxu0 0.0
        %1097 = vmatpush2.msra.mxu0 0.0
        %1098 = vmatprep.subr.mxu0 0.0
        %1099 = vmatpush2.msra.mxu0 0.0
        %1100 = vmatprep.subr.mxu0 0.0
        %1101 = vmatpush2.msra.mxu0 0.0
        %1102 = vmatprep.subr.mxu0 0.0
        %1103 = vmatpush2.msra.mxu0 0.0
        %1104 = vmatprep.subr.mxu0 0.0
        %1105 = vmatpush2.msra.mxu0 0.0
        %1106 = vmatprep.mubr.f32.mxu0 0.0
        %1107 = vmatmul.mubr.f32.gmra.mxu0 %v1040
        %v1108 = vpop.f32.mrf.mxu0
        %v1109 = vadd.f32 0.0, %v1108
        %v1110 = vpop.f32.mrf.mxu0
        %1111 = vdwg.mxu0
        %v1113 = vsel %vm921, %v964, 0
        %1115 = vmatprep.subr.mxu0 0.0
        %1116 = vmatpush1.msra.mxu0 0.0
        %1117 = vmatprep.subr.mxu0 0.0
        %1118 = vmatpush1.msra.mxu0 0.0
        %1119 = vmatprep.subr.mxu0 0.0
        %1120 = vmatpush1.msra.mxu0 0.0
        %1121 = vmatprep.subr.mxu0 0.0
        %1122 = vmatpush1.msra.mxu0 0.0
        %1123 = vmatprep.subr.mxu0 0.0
        %1124 = vmatpush1.msra.mxu0 0.0
        %1125 = vmatprep.subr.mxu0 0.0
        %1126 = vmatpush1.msra.mxu0 0.0
        %1127 = vmatprep.subr.mxu0 0.0
        %1128 = vmatpush1.msra.mxu0 0.0
        %1129 = vmatprep.subr.mxu0 0.0
        %1130 = vmatpush1.msra.mxu0 0.0
        %1131 = vmatprep.subr.mxu0 0.0
        %1132 = vmatpush1.msra.mxu0 0.0
        %1133 = vmatprep.subr.mxu0 0.0
        %1134 = vmatpush1.msra.mxu0 0.0
        %1135 = vmatprep.subr.mxu0 0.0
        %1136 = vmatpush1.msra.mxu0 0.0
        %1137 = vmatprep.subr.mxu0 0.0
        %1138 = vmatpush1.msra.mxu0 0.0
        %1139 = vmatprep.subr.mxu0 0.0
        %1140 = vmatpush1.msra.mxu0 0.0
        %1141 = vmatprep.subr.mxu0 0.0
        %1142 = vmatpush1.msra.mxu0 0.0
        %1143 = vmatprep.subr.mxu0 0.0
        %1144 = vmatpush1.msra.mxu0 0.0
        %1145 = vmatprep.subr.mxu0 0.0
        %1146 = vmatpush1.msra.mxu0 %v619
        %1147 = vmatprep.subr.mxu0 0.0
        %1148 = vmatpush2.msra.mxu0 0.0
        %1149 = vmatprep.subr.mxu0 0.0
        %1150 = vmatpush2.msra.mxu0 0.0
        %1151 = vmatprep.subr.mxu0 0.0
        %1152 = vmatpush2.msra.mxu0 0.0
        %1153 = vmatprep.subr.mxu0 0.0
        %1154 = vmatpush2.msra.mxu0 0.0
        %1155 = vmatprep.subr.mxu0 0.0
        %1156 = vmatpush2.msra.mxu0 0.0
        %1157 = vmatprep.subr.mxu0 0.0
        %1158 = vmatpush2.msra.mxu0 0.0
        %1159 = vmatprep.subr.mxu0 0.0
        %1160 = vmatpush2.msra.mxu0 0.0
        %1161 = vmatprep.subr.mxu0 0.0
        %1162 = vmatpush2.msra.mxu0 0.0
        %1163 = vmatprep.subr.mxu0 0.0
        %1164 = vmatpush2.msra.mxu0 0.0
        %1165 = vmatprep.subr.mxu0 0.0
        %1166 = vmatpush2.msra.mxu0 0.0
        %1167 = vmatprep.subr.mxu0 0.0
        %1168 = vmatpush2.msra.mxu0 0.0
        %1169 = vmatprep.subr.mxu0 0.0
        %1170 = vmatpush2.msra.mxu0 0.0
        %1171 = vmatprep.subr.mxu0 0.0
        %1172 = vmatpush2.msra.mxu0 0.0
        %1173 = vmatprep.subr.mxu0 0.0
        %1174 = vmatpush2.msra.mxu0 0.0
        %1175 = vmatprep.subr.mxu0 0.0
        %1176 = vmatpush2.msra.mxu0 0.0
        %1177 = vmatprep.subr.mxu0 0.0
        %1178 = vmatpush2.msra.mxu0 0.0
        %1179 = vmatprep.mubr.f32.mxu0 0.0
        %1180 = vmatmul.mubr.f32.gmra.mxu0 %v1113
        %v1181 = vpop.f32.mrf.mxu0
        %v1182 = vadd.f32 0.0, %v1181
        %v1183 = vpop.f32.mrf.mxu0
        %1184 = vdwg.mxu0
        %v1186 = vsel %vm921, %v965, 0
        %1188 = vmatprep.subr.mxu0 0.0
        %1189 = vmatpush1.msra.mxu0 0.0
        %1190 = vmatprep.subr.mxu0 0.0
        %1191 = vmatpush1.msra.mxu0 0.0
        %1192 = vmatprep.subr.mxu0 0.0
        %1193 = vmatpush1.msra.mxu0 0.0
        %1194 = vmatprep.subr.mxu0 0.0
        %1195 = vmatpush1.msra.mxu0 0.0
        %1196 = vmatprep.subr.mxu0 0.0
        %1197 = vmatpush1.msra.mxu0 0.0
        %1198 = vmatprep.subr.mxu0 0.0
        %1199 = vmatpush1.msra.mxu0 0.0
        %1200 = vmatprep.subr.mxu0 0.0
        %1201 = vmatpush1.msra.mxu0 0.0
        %1202 = vmatprep.subr.mxu0 0.0
        %1203 = vmatpush1.msra.mxu0 0.0
        %1204 = vmatprep.subr.mxu0 0.0
        %1205 = vmatpush1.msra.mxu0 0.0
        %1206 = vmatprep.subr.mxu0 0.0
        %1207 = vmatpush1.msra.mxu0 0.0
        %1208 = vmatprep.subr.mxu0 0.0
        %1209 = vmatpush1.msra.mxu0 0.0
        %1210 = vmatprep.subr.mxu0 0.0
        %1211 = vmatpush1.msra.mxu0 0.0
        %1212 = vmatprep.subr.mxu0 0.0
        %1213 = vmatpush1.msra.mxu0 0.0
        %1214 = vmatprep.subr.mxu0 0.0
        %1215 = vmatpush1.msra.mxu0 0.0
        %1216 = vmatprep.subr.mxu0 0.0
        %1217 = vmatpush1.msra.mxu0 0.0
        %1218 = vmatprep.subr.mxu0 0.0
        %1219 = vmatpush1.msra.mxu0 %v622
        %1220 = vmatprep.subr.mxu0 0.0
        %1221 = vmatpush2.msra.mxu0 0.0
        %1222 = vmatprep.subr.mxu0 0.0
        %1223 = vmatpush2.msra.mxu0 0.0
        %1224 = vmatprep.subr.mxu0 0.0
        %1225 = vmatpush2.msra.mxu0 0.0
        %1226 = vmatprep.subr.mxu0 0.0
        %1227 = vmatpush2.msra.mxu0 0.0
        %1228 = vmatprep.subr.mxu0 0.0
        %1229 = vmatpush2.msra.mxu0 0.0
        %1230 = vmatprep.subr.mxu0 0.0
        %1231 = vmatpush2.msra.mxu0 0.0
        %1232 = vmatprep.subr.mxu0 0.0
        %1233 = vmatpush2.msra.mxu0 0.0
        %1234 = vmatprep.subr.mxu0 0.0
        %1235 = vmatpush2.msra.mxu0 0.0
        %1236 = vmatprep.subr.mxu0 0.0
        %1237 = vmatpush2.msra.mxu0 0.0
        %1238 = vmatprep.subr.mxu0 0.0
        %1239 = vmatpush2.msra.mxu0 0.0
        %1240 = vmatprep.subr.mxu0 0.0
        %1241 = vmatpush2.msra.mxu0 0.0
        %1242 = vmatprep.subr.mxu0 0.0
        %1243 = vmatpush2.msra.mxu0 0.0
        %1244 = vmatprep.subr.mxu0 0.0
        %1245 = vmatpush2.msra.mxu0 0.0
        %1246 = vmatprep.subr.mxu0 0.0
        %1247 = vmatpush2.msra.mxu0 0.0
        %1248 = vmatprep.subr.mxu0 0.0
        %1249 = vmatpush2.msra.mxu0 0.0
        %1250 = vmatprep.subr.mxu0 0.0
        %1251 = vmatpush2.msra.mxu0 0.0
        %1252 = vmatprep.mubr.f32.mxu0 0.0
        %1253 = vmatmul.mubr.f32.gmra.mxu0 %v1186
        %v1254 = vpop.f32.mrf.mxu0
        %v1255 = vadd.f32 0.0, %v1254
        %v1256 = vpop.f32.mrf.mxu0
        %1257 = vdwg.mxu0
        %1259 = vrot.lane.b32.xlu0 %v1109, 32
        %v1260 = vpop.permute.xlu0 %1259
        %1263 = vrot.lane.b32.xlu0 %v1182, 64
        %v1264 = vpop.permute.xlu0 %1263
        %1267 = vrot.lane.b32.xlu0 %v1255, 96
        %v1268 = vpop.permute.xlu0 %1267
        %v1270 = vsel %vm624, %v1036, %v1260
        %vm1271 = vcmask 523264
        %v1272 = vsel %vm1271, %v1270, %v1264
        %vm1273 = vcmask 785408
        %v1274 = vsel %vm1273, %v1272, %v1268
        %v1275 = vld [vmem:[#allocation8] sm:$0xff]
        %v1276 = vld [vmem:[#allocation8 + $0x8] sm:$0xff]
        %v1277 = vld [vmem:[#allocation8 + $0x10] sm:$0xff]
        %v1278 = vld [vmem:[#allocation8 + $0x18] sm:$0xff]
        %v1279 = vld [vmem:[#allocation8 + $0x20] sm:$0xff]
        %v1280 = vld [vmem:[#allocation8 + $0x28] sm:$0xff]
        %v1281 = vld [vmem:[#allocation8 + $0x30] sm:$0xff]
        %v1282 = vld [vmem:[#allocation8 + $0x38] sm:$0xff]
        %v1283 = vld [vmem:[#allocation8 + $0x40] sm:$0xff]
        %v1284 = vld [vmem:[#allocation8 + $0x48] sm:$0xff]
        %v1285 = vld [vmem:[#allocation8 + $0x50] sm:$0xff]
        %v1286 = vld [vmem:[#allocation8 + $0x58] sm:$0xff]
        %v1287 = vld [vmem:[#allocation8 + $0x60] sm:$0xff]
        %v1288 = vld [vmem:[#allocation8 + $0x68] sm:$0xff]
        %v1289 = vld [vmem:[#allocation8 + $0x70] sm:$0xff]
        %v1290 = vld [vmem:[#allocation8 + $0x78] sm:$0xff]
        %v1291 = vlaneseq
        %v1292 = vshrl.u32 %v1291, 7
        %v1293 = vsub.s32 0, %v1292
        %v1294 = vrot.slane %v392, %v1293
        %1295 = vmatprep.subr.mxu0 0.0
        %1296 = vmatpush1.msra.mxu0 %v1290
        %1297 = vmatprep.subr.mxu0 0.0
        %1298 = vmatpush1.msra.mxu0 %v1289
        %1299 = vmatprep.subr.mxu0 0.0
        %1300 = vmatpush1.msra.mxu0 %v1288
        %1301 = vmatprep.subr.mxu0 0.0
        %1302 = vmatpush1.msra.mxu0 %v1287
        %1303 = vmatprep.subr.mxu0 0.0
        %1304 = vmatpush1.msra.mxu0 %v1286
        %1305 = vmatprep.subr.mxu0 0.0
        %1306 = vmatpush1.msra.mxu0 %v1285
        %1307 = vmatprep.subr.mxu0 0.0
        %1308 = vmatpush1.msra.mxu0 %v1284
        %1309 = vmatprep.subr.mxu0 0.0
        %1310 = vmatpush1.msra.mxu0 %v1283
        %1311 = vmatprep.subr.mxu0 0.0
        %1312 = vmatpush1.msra.mxu0 %v1282
        %1313 = vmatprep.subr.mxu0 0.0
        %1314 = vmatpush1.msra.mxu0 %v1281
        %1315 = vmatprep.subr.mxu0 0.0
        %1316 = vmatpush1.msra.mxu0 %v1280
        %1317 = vmatprep.subr.mxu0 0.0
        %1318 = vmatpush1.msra.mxu0 %v1279
        %1319 = vmatprep.subr.mxu0 0.0
        %1320 = vmatpush1.msra.mxu0 %v1278
        %1321 = vmatprep.subr.mxu0 0.0
        %1322 = vmatpush1.msra.mxu0 %v1277
        %1323 = vmatprep.subr.mxu0 0.0
        %1324 = vmatpush1.msra.mxu0 %v1276
        %1325 = vmatprep.subr.mxu0 0.0
        %1326 = vmatpush1.msra.mxu0 %v1275
        %1327 = vmatprep.subr.mxu0 0.0
        %1328 = vmatpush2.msra.mxu0 0.0
        %1329 = vmatprep.subr.mxu0 0.0
        %1330 = vmatpush2.msra.mxu0 0.0
        %1331 = vmatprep.subr.mxu0 0.0
        %1332 = vmatpush2.msra.mxu0 0.0
        %1333 = vmatprep.subr.mxu0 0.0
        %1334 = vmatpush2.msra.mxu0 0.0
        %1335 = vmatprep.subr.mxu0 0.0
        %1336 = vmatpush2.msra.mxu0 0.0
        %1337 = vmatprep.subr.mxu0 0.0
        %1338 = vmatpush2.msra.mxu0 0.0
        %1339 = vmatprep.subr.mxu0 0.0
        %1340 = vmatpush2.msra.mxu0 0.0
        %1341 = vmatprep.subr.mxu0 0.0
        %1342 = vmatpush2.msra.mxu0 0.0
        %1343 = vmatprep.subr.mxu0 0.0
        %1344 = vmatpush2.msra.mxu0 0.0
        %1345 = vmatprep.subr.mxu0 0.0
        %1346 = vmatpush2.msra.mxu0 0.0
        %1347 = vmatprep.subr.mxu0 0.0
        %1348 = vmatpush2.msra.mxu0 0.0
        %1349 = vmatprep.subr.mxu0 0.0
        %1350 = vmatpush2.msra.mxu0 0.0
        %1351 = vmatprep.subr.mxu0 0.0
        %1352 = vmatpush2.msra.mxu0 0.0
        %1353 = vmatprep.subr.mxu0 0.0
        %1354 = vmatpush2.msra.mxu0 0.0
        %1355 = vmatprep.subr.mxu0 0.0
        %1356 = vmatpush2.msra.mxu0 0.0
        %1357 = vmatprep.subr.mxu0 0.0
        %1358 = vmatpush2.msra.mxu0 0.0
        %1359 = vmatprep.mubr.f32.mxu0 0.0
        %1360 = vmatmul.mubr.f32.gmra.mxu0 %v1274
        %v1361 = vpop.f32.mrf.mxu0
        %v1362 = vadd.f32 %v1294, %v1361
        %v1363 = vpop.f32.mrf.mxu0
        %1364 = vdwg.mxu0
        %v1365 = vadd.f32 %v393, %v1362
        %1366 = vadd.xlane.f32.xlu0 %v1365
        %v1367 = vpop.xlane.xlu0 %1366
        %v1368 = vrcp.pop 128.0
        %v1369 = vmul.f32 %v1367, %v1368
        %v1370 = vsub.f32 %v1365, %v1369
        %v1371 = vmul.f32 %v1370, %v1370
        %1372 = vadd.xlane.f32.xlu0 %v1371
        %v1373 = vpop.xlane.xlu0 %1372
        %v1374 = vmul.f32 %v1373, %v1368
        %v1375 = vadd.f32 %v1374, 1e-05
        %v1376 = vrsqrt.pop %v1375
        %v1377 = vmul.f32 %v1370, %v1376
        %v1378 = vlaneseq
        %v1379 = vshrl.u32 %v1378, 7
        %v1380 = vsub.s32 1, %v1379
        %v1381 = vrot.slane %v392, %v1380
        %v1382 = vmul.f32 %v1377, %v1381
        %v1383 = vlaneseq
        %v1384 = vshrl.u32 %v1383, 7
        %v1385 = vsub.s32 2, %v1384
        %v1386 = vrot.slane %v392, %v1385
        %v1387 = vadd.f32 %v1382, %v1386
        %v1388 = vld [vmem:[#allocation10] sm:$0xff]
        %v1389 = vld [vmem:[#allocation10 + $0x8] sm:$0xff]
        %v1390 = vld [vmem:[#allocation10 + $0x10] sm:$0xff]
        %v1391 = vld [vmem:[#allocation10 + $0x18] sm:$0xff]
        %v1392 = vld [vmem:[#allocation10 + $0x20] sm:$0xff]
        %v1393 = vld [vmem:[#allocation10 + $0x28] sm:$0xff]
        %v1394 = vld [vmem:[#allocation10 + $0x30] sm:$0xff]
        %v1395 = vld [vmem:[#allocation10 + $0x38] sm:$0xff]
        %v1396 = vld [vmem:[#allocation10 + $0x40] sm:$0xff]
        %v1397 = vld [vmem:[#allocation10 + $0x48] sm:$0xff]
        %v1398 = vld [vmem:[#allocation10 + $0x50] sm:$0xff]
        %v1399 = vld [vmem:[#allocation10 + $0x58] sm:$0xff]
        %v1400 = vld [vmem:[#allocation10 + $0x60] sm:$0xff]
        %v1401 = vld [vmem:[#allocation10 + $0x68] sm:$0xff]
        %v1402 = vld [vmem:[#allocation10 + $0x70] sm:$0xff]
        %v1403 = vld [vmem:[#allocation10 + $0x78] sm:$0xff]
        %v1404 = vld [vmem:[#allocation10 + $0x80] sm:$0xff]
        %v1405 = vld [vmem:[#allocation10 + $0x88] sm:$0xff]
        %v1406 = vld [vmem:[#allocation10 + $0x90] sm:$0xff]
        %v1407 = vld [vmem:[#allocation10 + $0x98] sm:$0xff]
        %v1408 = vld [vmem:[#allocation10 + $0xa0] sm:$0xff]
        %v1409 = vld [vmem:[#allocation10 + $0xa8] sm:$0xff]
        %v1410 = vld [vmem:[#allocation10 + $0xb0] sm:$0xff]
        %v1411 = vld [vmem:[#allocation10 + $0xb8] sm:$0xff]
        %v1412 = vld [vmem:[#allocation10 + $0xc0] sm:$0xff]
        %v1413 = vld [vmem:[#allocation10 + $0xc8] sm:$0xff]
        %v1414 = vld [vmem:[#allocation10 + $0xd0] sm:$0xff]
        %v1415 = vld [vmem:[#allocation10 + $0xd8] sm:$0xff]
        %v1416 = vld [vmem:[#allocation10 + $0xe0] sm:$0xff]
        %v1417 = vld [vmem:[#allocation10 + $0xe8] sm:$0xff]
        %v1418 = vld [vmem:[#allocation10 + $0xf0] sm:$0xff]
        %v1419 = vld [vmem:[#allocation10 + $0xf8] sm:$0xff]
        %v1420 = vld [vmem:[#allocation10 + $0x100] sm:$0xff]
        %v1421 = vld [vmem:[#allocation10 + $0x108] sm:$0xff]
        %v1422 = vld [vmem:[#allocation10 + $0x110] sm:$0xff]
        %v1423 = vld [vmem:[#allocation10 + $0x118] sm:$0xff]
        %v1424 = vld [vmem:[#allocation10 + $0x120] sm:$0xff]
        %v1425 = vld [vmem:[#allocation10 + $0x128] sm:$0xff]
        %v1426 = vld [vmem:[#allocation10 + $0x130] sm:$0xff]
        %v1427 = vld [vmem:[#allocation10 + $0x138] sm:$0xff]
        %v1428 = vld [vmem:[#allocation10 + $0x140] sm:$0xff]
        %v1429 = vld [vmem:[#allocation10 + $0x148] sm:$0xff]
        %v1430 = vld [vmem:[#allocation10 + $0x150] sm:$0xff]
        %v1431 = vld [vmem:[#allocation10 + $0x158] sm:$0xff]
        %v1432 = vld [vmem:[#allocation10 + $0x160] sm:$0xff]
        %v1433 = vld [vmem:[#allocation10 + $0x168] sm:$0xff]
        %v1434 = vld [vmem:[#allocation10 + $0x170] sm:$0xff]
        %v1435 = vld [vmem:[#allocation10 + $0x178] sm:$0xff]
        %v1436 = vld [vmem:[#allocation10 + $0x180] sm:$0xff]
        %v1437 = vld [vmem:[#allocation10 + $0x188] sm:$0xff]
        %v1438 = vld [vmem:[#allocation10 + $0x190] sm:$0xff]
        %v1439 = vld [vmem:[#allocation10 + $0x198] sm:$0xff]
        %v1440 = vld [vmem:[#allocation10 + $0x1a0] sm:$0xff]
        %v1441 = vld [vmem:[#allocation10 + $0x1a8] sm:$0xff]
        %v1442 = vld [vmem:[#allocation10 + $0x1b0] sm:$0xff]
        %v1443 = vld [vmem:[#allocation10 + $0x1b8] sm:$0xff]
        %v1444 = vld [vmem:[#allocation10 + $0x1c0] sm:$0xff]
        %v1445 = vld [vmem:[#allocation10 + $0x1c8] sm:$0xff]
        %v1446 = vld [vmem:[#allocation10 + $0x1d0] sm:$0xff]
        %v1447 = vld [vmem:[#allocation10 + $0x1d8] sm:$0xff]
        %v1448 = vld [vmem:[#allocation10 + $0x1e0] sm:$0xff]
        %v1449 = vld [vmem:[#allocation10 + $0x1e8] sm:$0xff]
        %v1450 = vld [vmem:[#allocation10 + $0x1f0] sm:$0xff]
        %v1451 = vld [vmem:[#allocation10 + $0x1f8] sm:$0xff]
        %v1452 = vld [vmem:[%s5] sm:$0xf]
        %v1454 = vlaneseq
        %v1455 = vshrl.u32 %v1454, 7
        %v1456 = vsub.s32 0, %v1455
        %v1457 = vrot.slane %v1452, %v1456
        %v1458 = vlaneseq
        %v1459 = vshrl.u32 %v1458, 7
        %v1460 = vsub.s32 1, %v1459
        %v1461 = vrot.slane %v1452, %v1460
        %v1462 = vlaneseq
        %v1463 = vshrl.u32 %v1462, 7
        %v1464 = vsub.s32 2, %v1463
        %v1465 = vrot.slane %v1452, %v1464
        %v1466 = vlaneseq
        %v1467 = vshrl.u32 %v1466, 7
        %v1468 = vsub.s32 3, %v1467
        %v1469 = vrot.slane %v1452, %v1468
        %1474 = vmatprep.subr.mxu0 %v1449
        %1475 = vmatpush1.msra.mxu0 %v1448
        %1476 = vmatprep.subr.mxu0 %v1445
        %1477 = vmatpush1.msra.mxu0 %v1444
        %1478 = vmatprep.subr.mxu0 %v1441
        %1479 = vmatpush1.msra.mxu0 %v1440
        %1480 = vmatprep.subr.mxu0 %v1437
        %1481 = vmatpush1.msra.mxu0 %v1436
        %1482 = vmatprep.subr.mxu0 %v1433
        %1483 = vmatpush1.msra.mxu0 %v1432
        %1484 = vmatprep.subr.mxu0 %v1429
        %1485 = vmatpush1.msra.mxu0 %v1428
        %1486 = vmatprep.subr.mxu0 %v1425
        %1487 = vmatpush1.msra.mxu0 %v1424
        %1488 = vmatprep.subr.mxu0 %v1421
        %1489 = vmatpush1.msra.mxu0 %v1420
        %1490 = vmatprep.subr.mxu0 %v1417
        %1491 = vmatpush1.msra.mxu0 %v1416
        %1492 = vmatprep.subr.mxu0 %v1413
        %1493 = vmatpush1.msra.mxu0 %v1412
        %1494 = vmatprep.subr.mxu0 %v1409
        %1495 = vmatpush1.msra.mxu0 %v1408
        %1496 = vmatprep.subr.mxu0 %v1405
        %1497 = vmatpush1.msra.mxu0 %v1404
        %1498 = vmatprep.subr.mxu0 %v1401
        %1499 = vmatpush1.msra.mxu0 %v1400
        %1500 = vmatprep.subr.mxu0 %v1397
        %1501 = vmatpush1.msra.mxu0 %v1396
        %1502 = vmatprep.subr.mxu0 %v1393
        %1503 = vmatpush1.msra.mxu0 %v1392
        %1504 = vmatprep.subr.mxu0 %v1389
        %1505 = vmatpush1.msra.mxu0 %v1388
        %1506 = vmatprep.subr.mxu0 0.0
        %1507 = vmatpush2.msra.mxu0 0.0
        %1508 = vmatprep.subr.mxu0 0.0
        %1509 = vmatpush2.msra.mxu0 0.0
        %1510 = vmatprep.subr.mxu0 0.0
        %1511 = vmatpush2.msra.mxu0 0.0
        %1512 = vmatprep.subr.mxu0 0.0
        %1513 = vmatpush2.msra.mxu0 0.0
        %1514 = vmatprep.subr.mxu0 0.0
        %1515 = vmatpush2.msra.mxu0 0.0
        %1516 = vmatprep.subr.mxu0 0.0
        %1517 = vmatpush2.msra.mxu0 0.0
        %1518 = vmatprep.subr.mxu0 0.0
        %1519 = vmatpush2.msra.mxu0 0.0
        %1520 = vmatprep.subr.mxu0 0.0
        %1521 = vmatpush2.msra.mxu0 0.0
        %1522 = vmatprep.subr.mxu0 0.0
        %1523 = vmatpush2.msra.mxu0 0.0
        %1524 = vmatprep.subr.mxu0 0.0
        %1525 = vmatpush2.msra.mxu0 0.0
        %1526 = vmatprep.subr.mxu0 0.0
        %1527 = vmatpush2.msra.mxu0 0.0
        %1528 = vmatprep.subr.mxu0 0.0
        %1529 = vmatpush2.msra.mxu0 0.0
        %1530 = vmatprep.subr.mxu0 0.0
        %1531 = vmatpush2.msra.mxu0 0.0
        %1532 = vmatprep.subr.mxu0 0.0
        %1533 = vmatpush2.msra.mxu0 0.0
        %1534 = vmatprep.subr.mxu0 0.0
        %1535 = vmatpush2.msra.mxu0 0.0
        %1536 = vmatprep.subr.mxu0 0.0
        %1537 = vmatpush2.msra.mxu0 0.0
        %1538 = vmatprep.mubr.f32.mxu0 0.0
        %1539 = vmatmul.mubr.f32.gmra.mxu0 %v1387
        %v1540 = vpop.f32.mrf.mxu0
        %v1541 = vadd.f32 %v1457, %v1540
        %v1542 = vpop.f32.mrf.mxu0
        %v1543 = vadd.f32 %v1461, %v1542
        %1544 = vdwg.mxu0
        %1545 = vmatprep.subr.mxu0 %v1451
        %1546 = vmatpush1.msra.mxu0 %v1450
        %1547 = vmatprep.subr.mxu0 %v1447
        %1548 = vmatpush1.msra.mxu0 %v1446
        %1549 = vmatprep.subr.mxu0 %v1443
        %1550 = vmatpush1.msra.mxu0 %v1442
        %1551 = vmatprep.subr.mxu0 %v1439
        %1552 = vmatpush1.msra.mxu0 %v1438
        %1553 = vmatprep.subr.mxu0 %v1435
        %1554 = vmatpush1.msra.mxu0 %v1434
        %1555 = vmatprep.subr.mxu0 %v1431
        %1556 = vmatpush1.msra.mxu0 %v1430
        %1557 = vmatprep.subr.mxu0 %v1427
        %1558 = vmatpush1.msra.mxu0 %v1426
        %1559 = vmatprep.subr.mxu0 %v1423
        %1560 = vmatpush1.msra.mxu0 %v1422
        %1561 = vmatprep.subr.mxu0 %v1419
        %1562 = vmatpush1.msra.mxu0 %v1418
        %1563 = vmatprep.subr.mxu0 %v1415
        %1564 = vmatpush1.msra.mxu0 %v1414
        %1565 = vmatprep.subr.mxu0 %v1411
        %1566 = vmatpush1.msra.mxu0 %v1410
        %1567 = vmatprep.subr.mxu0 %v1407
        %1568 = vmatpush1.msra.mxu0 %v1406
        %1569 = vmatprep.subr.mxu0 %v1403
        %1570 = vmatpush1.msra.mxu0 %v1402
        %1571 = vmatprep.subr.mxu0 %v1399
        %1572 = vmatpush1.msra.mxu0 %v1398
        %1573 = vmatprep.subr.mxu0 %v1395
        %1574 = vmatpush1.msra.mxu0 %v1394
        %1575 = vmatprep.subr.mxu0 %v1391
        %1576 = vmatpush1.msra.mxu0 %v1390
        %1577 = vmatprep.subr.mxu0 0.0
        %1578 = vmatpush2.msra.mxu0 0.0
        %1579 = vmatprep.subr.mxu0 0.0
        %1580 = vmatpush2.msra.mxu0 0.0
        %1581 = vmatprep.subr.mxu0 0.0
        %1582 = vmatpush2.msra.mxu0 0.0
        %1583 = vmatprep.subr.mxu0 0.0
        %1584 = vmatpush2.msra.mxu0 0.0
        %1585 = vmatprep.subr.mxu0 0.0
        %1586 = vmatpush2.msra.mxu0 0.0
        %1587 = vmatprep.subr.mxu0 0.0
        %1588 = vmatpush2.msra.mxu0 0.0
        %1589 = vmatprep.subr.mxu0 0.0
        %1590 = vmatpush2.msra.mxu0 0.0
        %1591 = vmatprep.subr.mxu0 0.0
        %1592 = vmatpush2.msra.mxu0 0.0
        %1593 = vmatprep.subr.mxu0 0.0
        %1594 = vmatpush2.msra.mxu0 0.0
        %1595 = vmatprep.subr.mxu0 0.0
        %1596 = vmatpush2.msra.mxu0 0.0
        %1597 = vmatprep.subr.mxu0 0.0
        %1598 = vmatpush2.msra.mxu0 0.0
        %1599 = vmatprep.subr.mxu0 0.0
        %1600 = vmatpush2.msra.mxu0 0.0
        %1601 = vmatprep.subr.mxu0 0.0
        %1602 = vmatpush2.msra.mxu0 0.0
        %1603 = vmatprep.subr.mxu0 0.0
        %1604 = vmatpush2.msra.mxu0 0.0
        %1605 = vmatprep.subr.mxu0 0.0
        %1606 = vmatpush2.msra.mxu0 0.0
        %1607 = vmatprep.subr.mxu0 0.0
        %1608 = vmatpush2.msra.mxu0 0.0
        %1609 = vmatprep.mubr.f32.mxu0 0.0
        %1610 = vmatmul.mubr.f32.gmra.mxu0 %v1387
        %v1611 = vpop.f32.mrf.mxu0
        %v1612 = vadd.f32 %v1465, %v1611
        %v1613 = vpop.f32.mrf.mxu0
        %v1614 = vadd.f32 %v1469, %v1613
        %1615 = vdwg.mxu0
        %v1616 = vmax.f32 %v1541, 0.0
        %v1617 = vmax.f32 %v1543, 0.0
        %v1618 = vmax.f32 %v1612, 0.0
        %v1619 = vmax.f32 %v1614, 0.0
        %v1620 = vld [vmem:[#allocation11] sm:$0xff]
        %v1621 = vld [vmem:[#allocation11 + $0x8] sm:$0xff]
        %v1622 = vld [vmem:[#allocation11 + $0x10] sm:$0xff]
        %v1623 = vld [vmem:[#allocation11 + $0x18] sm:$0xff]
        %v1624 = vld [vmem:[#allocation11 + $0x20] sm:$0xff]
        %v1625 = vld [vmem:[#allocation11 + $0x28] sm:$0xff]
        %v1626 = vld [vmem:[#allocation11 + $0x30] sm:$0xff]
        %v1627 = vld [vmem:[#allocation11 + $0x38] sm:$0xff]
        %v1628 = vld [vmem:[#allocation11 + $0x40] sm:$0xff]
        %v1629 = vld [vmem:[#allocation11 + $0x48] sm:$0xff]
        %v1630 = vld [vmem:[#allocation11 + $0x50] sm:$0xff]
        %v1631 = vld [vmem:[#allocation11 + $0x58] sm:$0xff]
        %v1632 = vld [vmem:[#allocation11 + $0x60] sm:$0xff]
        %v1633 = vld [vmem:[#allocation11 + $0x68] sm:$0xff]
        %v1634 = vld [vmem:[#allocation11 + $0x70] sm:$0xff]
        %v1635 = vld [vmem:[#allocation11 + $0x78] sm:$0xff]
        %v1636 = vld [vmem:[#allocation11 + $0x80] sm:$0xff]
        %v1637 = vld [vmem:[#allocation11 + $0x88] sm:$0xff]
        %v1638 = vld [vmem:[#allocation11 + $0x90] sm:$0xff]
        %v1639 = vld [vmem:[#allocation11 + $0x98] sm:$0xff]
        %v1640 = vld [vmem:[#allocation11 + $0xa0] sm:$0xff]
        %v1641 = vld [vmem:[#allocation11 + $0xa8] sm:$0xff]
        %v1642 = vld [vmem:[#allocation11 + $0xb0] sm:$0xff]
        %v1643 = vld [vmem:[#allocation11 + $0xb8] sm:$0xff]
        %v1644 = vld [vmem:[#allocation11 + $0xc0] sm:$0xff]
        %v1645 = vld [vmem:[#allocation11 + $0xc8] sm:$0xff]
        %v1646 = vld [vmem:[#allocation11 + $0xd0] sm:$0xff]
        %v1647 = vld [vmem:[#allocation11 + $0xd8] sm:$0xff]
        %v1648 = vld [vmem:[#allocation11 + $0xe0] sm:$0xff]
        %v1649 = vld [vmem:[#allocation11 + $0xe8] sm:$0xff]
        %v1650 = vld [vmem:[#allocation11 + $0xf0] sm:$0xff]
        %v1651 = vld [vmem:[#allocation11 + $0xf8] sm:$0xff]
        %v1652 = vld [vmem:[#allocation11 + $0x100] sm:$0xff]
        %v1653 = vld [vmem:[#allocation11 + $0x108] sm:$0xff]
        %v1654 = vld [vmem:[#allocation11 + $0x110] sm:$0xff]
        %v1655 = vld [vmem:[#allocation11 + $0x118] sm:$0xff]
        %v1656 = vld [vmem:[#allocation11 + $0x120] sm:$0xff]
        %v1657 = vld [vmem:[#allocation11 + $0x128] sm:$0xff]
        %v1658 = vld [vmem:[#allocation11 + $0x130] sm:$0xff]
        %v1659 = vld [vmem:[#allocation11 + $0x138] sm:$0xff]
        %v1660 = vld [vmem:[#allocation11 + $0x140] sm:$0xff]
        %v1661 = vld [vmem:[#allocation11 + $0x148] sm:$0xff]
        %v1662 = vld [vmem:[#allocation11 + $0x150] sm:$0xff]
        %v1663 = vld [vmem:[#allocation11 + $0x158] sm:$0xff]
        %v1664 = vld [vmem:[#allocation11 + $0x160] sm:$0xff]
        %v1665 = vld [vmem:[#allocation11 + $0x168] sm:$0xff]
        %v1666 = vld [vmem:[#allocation11 + $0x170] sm:$0xff]
        %v1667 = vld [vmem:[#allocation11 + $0x178] sm:$0xff]
        %v1668 = vld [vmem:[#allocation11 + $0x180] sm:$0xff]
        %v1669 = vld [vmem:[#allocation11 + $0x188] sm:$0xff]
        %v1670 = vld [vmem:[#allocation11 + $0x190] sm:$0xff]
        %v1671 = vld [vmem:[#allocation11 + $0x198] sm:$0xff]
        %v1672 = vld [vmem:[#allocation11 + $0x1a0] sm:$0xff]
        %v1673 = vld [vmem:[#allocation11 + $0x1a8] sm:$0xff]
        %v1674 = vld [vmem:[#allocation11 + $0x1b0] sm:$0xff]
        %v1675 = vld [vmem:[#allocation11 + $0x1b8] sm:$0xff]
        %v1676 = vld [vmem:[#allocation11 + $0x1c0] sm:$0xff]
        %v1677 = vld [vmem:[#allocation11 + $0x1c8] sm:$0xff]
        %v1678 = vld [vmem:[#allocation11 + $0x1d0] sm:$0xff]
        %v1679 = vld [vmem:[#allocation11 + $0x1d8] sm:$0xff]
        %v1680 = vld [vmem:[#allocation11 + $0x1e0] sm:$0xff]
        %v1681 = vld [vmem:[#allocation11 + $0x1e8] sm:$0xff]
        %v1682 = vld [vmem:[#allocation11 + $0x1f0] sm:$0xff]
        %v1683 = vld [vmem:[#allocation11 + $0x1f8] sm:$0xff]
        %v1684 = vlaneseq
        %v1685 = vshrl.u32 %v1684, 7
        %v1686 = vsub.s32 3, %v1685
        %v1687 = vrot.slane %v392, %v1686
        %1688 = vmatprep.subr.mxu0 0.0
        %1689 = vmatpush1.msra.mxu0 %v1635
        %1690 = vmatprep.subr.mxu0 0.0
        %1691 = vmatpush1.msra.mxu0 %v1634
        %1692 = vmatprep.subr.mxu0 0.0
        %1693 = vmatpush1.msra.mxu0 %v1633
        %1694 = vmatprep.subr.mxu0 0.0
        %1695 = vmatpush1.msra.mxu0 %v1632
        %1696 = vmatprep.subr.mxu0 0.0
        %1697 = vmatpush1.msra.mxu0 %v1631
        %1698 = vmatprep.subr.mxu0 0.0
        %1699 = vmatpush1.msra.mxu0 %v1630
        %1700 = vmatprep.subr.mxu0 0.0
        %1701 = vmatpush1.msra.mxu0 %v1629
        %1702 = vmatprep.subr.mxu0 0.0
        %1703 = vmatpush1.msra.mxu0 %v1628
        %1704 = vmatprep.subr.mxu0 0.0
        %1705 = vmatpush1.msra.mxu0 %v1627
        %1706 = vmatprep.subr.mxu0 0.0
        %1707 = vmatpush1.msra.mxu0 %v1626
        %1708 = vmatprep.subr.mxu0 0.0
        %1709 = vmatpush1.msra.mxu0 %v1625
        %1710 = vmatprep.subr.mxu0 0.0
        %1711 = vmatpush1.msra.mxu0 %v1624
        %1712 = vmatprep.subr.mxu0 0.0
        %1713 = vmatpush1.msra.mxu0 %v1623
        %1714 = vmatprep.subr.mxu0 0.0
        %1715 = vmatpush1.msra.mxu0 %v1622
        %1716 = vmatprep.subr.mxu0 0.0
        %1717 = vmatpush1.msra.mxu0 %v1621
        %1718 = vmatprep.subr.mxu0 0.0
        %1719 = vmatpush1.msra.mxu0 %v1620
        %1720 = vmatprep.subr.mxu0 0.0
        %1721 = vmatpush2.msra.mxu0 %v1651
        %1722 = vmatprep.subr.mxu0 0.0
        %1723 = vmatpush2.msra.mxu0 %v1650
        %1724 = vmatprep.subr.mxu0 0.0
        %1725 = vmatpush2.msra.mxu0 %v1649
        %1726 = vmatprep.subr.mxu0 0.0
        %1727 = vmatpush2.msra.mxu0 %v1648
        %1728 = vmatprep.subr.mxu0 0.0
        %1729 = vmatpush2.msra.mxu0 %v1647
        %1730 = vmatprep.subr.mxu0 0.0
        %1731 = vmatpush2.msra.mxu0 %v1646
        %1732 = vmatprep.subr.mxu0 0.0
        %1733 = vmatpush2.msra.mxu0 %v1645
        %1734 = vmatprep.subr.mxu0 0.0
        %1735 = vmatpush2.msra.mxu0 %v1644
        %1736 = vmatprep.subr.mxu0 0.0
        %1737 = vmatpush2.msra.mxu0 %v1643
        %1738 = vmatprep.subr.mxu0 0.0
        %1739 = vmatpush2.msra.mxu0 %v1642
        %1740 = vmatprep.subr.mxu0 0.0
        %1741 = vmatpush2.msra.mxu0 %v1641
        %1742 = vmatprep.subr.mxu0 0.0
        %1743 = vmatpush2.msra.mxu0 %v1640
        %1744 = vmatprep.subr.mxu0 0.0
        %1745 = vmatpush2.msra.mxu0 %v1639
        %1746 = vmatprep.subr.mxu0 0.0
        %1747 = vmatpush2.msra.mxu0 %v1638
        %1748 = vmatprep.subr.mxu0 0.0
        %1749 = vmatpush2.msra.mxu0 %v1637
        %1750 = vmatprep.subr.mxu0 0.0
        %1751 = vmatpush2.msra.mxu0 %v1636
        %1752 = vmatprep.mubr.f32.mxu0 %v1617
        %1753 = vmatmul.mubr.f32.gmra.mxu0 %v1616
        %v1754 = vpop.f32.mrf.mxu0
        %v1755 = vadd.f32 %v1687, %v1754
        %v1756 = vpop.f32.mrf.mxu0
        %1757 = vdwg.mxu0
        %1758 = vmatprep.subr.mxu0 0.0
        %1759 = vmatpush1.msra.mxu0 %v1667
        %1760 = vmatprep.subr.mxu0 0.0
        %1761 = vmatpush1.msra.mxu0 %v1666
        %1762 = vmatprep.subr.mxu0 0.0
        %1763 = vmatpush1.msra.mxu0 %v1665
        %1764 = vmatprep.subr.mxu0 0.0
        %1765 = vmatpush1.msra.mxu0 %v1664
        %1766 = vmatprep.subr.mxu0 0.0
        %1767 = vmatpush1.msra.mxu0 %v1663
        %1768 = vmatprep.subr.mxu0 0.0
        %1769 = vmatpush1.msra.mxu0 %v1662
        %1770 = vmatprep.subr.mxu0 0.0
        %1771 = vmatpush1.msra.mxu0 %v1661
        %1772 = vmatprep.subr.mxu0 0.0
        %1773 = vmatpush1.msra.mxu0 %v1660
        %1774 = vmatprep.subr.mxu0 0.0
        %1775 = vmatpush1.msra.mxu0 %v1659
        %1776 = vmatprep.subr.mxu0 0.0
        %1777 = vmatpush1.msra.mxu0 %v1658
        %1778 = vmatprep.subr.mxu0 0.0
        %1779 = vmatpush1.msra.mxu0 %v1657
        %1780 = vmatprep.subr.mxu0 0.0
        %1781 = vmatpush1.msra.mxu0 %v1656
        %1782 = vmatprep.subr.mxu0 0.0
        %1783 = vmatpush1.msra.mxu0 %v1655
        %1784 = vmatprep.subr.mxu0 0.0
        %1785 = vmatpush1.msra.mxu0 %v1654
        %1786 = vmatprep.subr.mxu0 0.0
        %1787 = vmatpush1.msra.mxu0 %v1653
        %1788 = vmatprep.subr.mxu0 0.0
        %1789 = vmatpush1.msra.mxu0 %v1652
        %1790 = vmatprep.subr.mxu0 0.0
        %1791 = vmatpush2.msra.mxu0 %v1683
        %1792 = vmatprep.subr.mxu0 0.0
        %1793 = vmatpush2.msra.mxu0 %v1682
        %1794 = vmatprep.subr.mxu0 0.0
        %1795 = vmatpush2.msra.mxu0 %v1681
        %1796 = vmatprep.subr.mxu0 0.0
        %1797 = vmatpush2.msra.mxu0 %v1680
        %1798 = vmatprep.subr.mxu0 0.0
        %1799 = vmatpush2.msra.mxu0 %v1679
        %1800 = vmatprep.subr.mxu0 0.0
        %1801 = vmatpush2.msra.mxu0 %v1678
        %1802 = vmatprep.subr.mxu0 0.0
        %1803 = vmatpush2.msra.mxu0 %v1677
        %1804 = vmatprep.subr.mxu0 0.0
        %1805 = vmatpush2.msra.mxu0 %v1676
        %1806 = vmatprep.subr.mxu0 0.0
        %1807 = vmatpush2.msra.mxu0 %v1675
        %1808 = vmatprep.subr.mxu0 0.0
        %1809 = vmatpush2.msra.mxu0 %v1674
        %1810 = vmatprep.subr.mxu0 0.0
        %1811 = vmatpush2.msra.mxu0 %v1673
        %1812 = vmatprep.subr.mxu0 0.0
        %1813 = vmatpush2.msra.mxu0 %v1672
        %1814 = vmatprep.subr.mxu0 0.0
        %1815 = vmatpush2.msra.mxu0 %v1671
        %1816 = vmatprep.subr.mxu0 0.0
        %1817 = vmatpush2.msra.mxu0 %v1670
        %1818 = vmatprep.subr.mxu0 0.0
        %1819 = vmatpush2.msra.mxu0 %v1669
        %1820 = vmatprep.subr.mxu0 0.0
        %1821 = vmatpush2.msra.mxu0 %v1668
        %1822 = vmatprep.mubr.f32.mxu0 %v1619
        %1823 = vmatmul.mubr.f32.gmra.mxu0 %v1618
        %v1824 = vpop.f32.mrf.mxu0
        %v1825 = vadd.f32 %v1755, %v1824
        %v1826 = vpop.f32.mrf.mxu0
        %1827 = vdwg.mxu0
        %v1828 = vadd.f32 %v1387, %v1825
        %1829 = vadd.xlane.f32.xlu0 %v1828
        %v1830 = vpop.xlane.xlu0 %1829
        %v1831 = vmul.f32 %v1830, %v1368
        %v1832 = vsub.f32 %v1828, %v1831
        %v1833 = vmul.f32 %v1832, %v1832
        %1834 = vadd.xlane.f32.xlu0 %v1833
        %v1835 = vpop.xlane.xlu0 %1834
        %v1836 = vmul.f32 %v1835, %v1368
        %v1837 = vadd.f32 %v1836, 1e-05
        %v1838 = vrsqrt.pop %v1837
        %v1839 = vmul.f32 %v1832, %v1838
        %v1840 = vlaneseq
        %v1841 = vshrl.u32 %v1840, 7
        %v1842 = vsub.s32 4, %v1841
        %v1843 = vrot.slane %v392, %v1842
        %v1844 = vmul.f32 %v1839, %v1843
        %v1845 = vlaneseq
        %v1846 = vshrl.u32 %v1845, 7
        %v1847 = vsub.s32 5, %v1846
        %v1848 = vrot.slane %v392, %v1847
        %v1849 = vadd.f32 %v1844, %v1848
        %1850 = vst [vmem:[%s391] sm:$0xff] %v1849
        %s1851 = sand.u32 %s209, 1
        %s1852 = scalar_lea.sflag [#allocation4], %s1851
        %s1853 = sand.u32 %s209, 1
        %s1854 = smul.addr %s1853, 8
        %s1855 = scalar_lea.vmem [#allocation13], %s1854
        // Predicated region
        $region77: #{tpu_custom_call.1} parent=51 // pred_check
          %p1856 = pneg %p219
        $region78: #{tpu_custom_call.1} parent=51 // pred_check_branch
          %1858 = sbr.rel (%p1856) target = $region80
        $region79: #{tpu_custom_call.1} parent=51 // pred_region
          %s1860 = ssub.s32 128, 128
          %1861 = vsyncadd %s1852, %s1860
          %s1862 = smul.addr %s28, 128
          %s1863 = scalar_lea.hbm %s8, %s1862
          %s1865 = sshll.u32 %s1855, 4
          %s1866 = int_to_ptr.vmem [resolvable:$true] %s1865
          %1868 = dma.vmem_to_hbm [thread:$0]  %s1866, 128, %s1863, %s1852
        $region80: #{tpu_custom_call.1} parent=51 // pred_fallthru
          _
      $region52: #{tpu_custom_call.1} parent=5 // pred_fallthru
        _
      %p1869 = scmp.le.s32.totalorder 2, %s23
      // Predicated region
      $region81: #{tpu_custom_call.1} parent=5 // pred_check
        %p1870 = pneg %p1869
      $region82: #{tpu_custom_call.1} parent=5 // pred_check_branch
        %1872 = sbr.rel (%p1870) target = $region84
      $region83: #{tpu_custom_call.1} parent=5 // pred_region
        %s1873 = ssub.s32 %s23, 2
        // Predicated region
        $region85: #{tpu_custom_call.1} parent=83 // pred_check
          %p1874 = pneg %p225
        $region86: #{tpu_custom_call.1} parent=83 // pred_check_branch
          %1876 = sbr.rel (%p1874) target = $region88
        $region87: #{tpu_custom_call.1} parent=83 // pred_region
          %s1877 = sand.u32 %s210, 1
          %s1878 = scalar_lea.sflag [#allocation4], %s1877
          %s1879 = sand.u32 %s210, 1
          %s1880 = smul.addr %s1879, 8
          %s1881 = scalar_lea.vmem [#allocation13], %s1880
          %1882 = dma.done %s1878, 128
        $region88: #{tpu_custom_call.1} parent=83 // pred_fallthru
          _
      $region84: #{tpu_custom_call.1} parent=5 // pred_fallthru
        _
    $region6: #{tpu_custom_call.1} parent=1 // loop_footer
      %s27 = sadd.s32 1, %s23
    $region7: #{tpu_custom_call.1} parent=1 // loop_footer_branch
      %22 = sbr.rel target = $region3
    $region8: #{tpu_custom_call.1} parent=1 // loop_exit
      _
    %1883 = vsyncpa [#allocation3], 1
    %s1884 = scalar_lea.sflag [#allocation3], 1
    %1885 = vsyncpa %s1884, 1
    %1886 = vsyncpa [#allocation6], 1
    %1887 = vsyncpa [#allocation9], 1
    %1888 = vsyncpa [#allocation12], 1
    %1889 = vsyncpa [#allocation4], 1
    %s1890 = scalar_lea.sflag [#allocation4], 1
    %1891 = vsyncpa %s1890, 1

</llo_original>
